<compile_context>
chip_gen: v7x
topology: tpu7x:2x2x1
jax: 0.10.0
libtpu: 0.0.40
codegen_flags: <defaults>
</compile_context>

<pallas_src>
import functools

import jax
import jax.numpy as jnp
import numpy as np
from jax import lax
from jax.experimental import pallas as pl
from jax.experimental.pallas import tpu as pltpu


def _round_up(v, m):
    return (v + m - 1) // m * m


def _dw_pw_kernel(x_ref, dwf_ref, b1_ref, w2_ref, b2_ref, out_ref, *,
                  H, RC, W, C, Cout, use_kron, mxu_dtype):
    """One batch image per grid step.

    x_ref:   (1, H+2, WC2p)   padded, lane-packed input rows (act dtype)
    dwf_ref: (9, W*C)         depthwise taps (BN1 scale folded), tiled over W
    b1_ref:  (1, W*C)         BN1 bias, tiled over W (f32)
    w2_ref:  (W*C, W*Cout)    block-diag pointwise weight   (use_kron=True)
             (C, Cout)        plain pointwise weight        (use_kron=False)
    b2_ref:  (1, W*Cout)      BN2 bias, tiled over W (f32)
    out_ref: (1, H, W*Cout)
    """
    WC = W * C
    dwf = dwf_ref[...]          # (9, WC)  f32, BN1 scale folded in
    b1 = b1_ref[...]            # (1, WC)  f32
    b2 = b2_ref[...]            # (1, WCo) f32
    w2 = w2_ref[...]            # mxu_dtype

    n_chunks = H // RC          # static python loop over row chunks
    for chunk in range(n_chunks):
        r0 = chunk * RC
        # (RC+2)-row halo window, upcast once so elementwise math is f32
        # (v5e VPU has no bf16).
        # TODO(synk): compute the taps directly in bf16 on v6e/v7x (bf16 VALU).
        xw = x_ref[0, r0:r0 + RC + 2, :].astype(jnp.float32)   # (RC+2, WC2p)

        # Depthwise 3x3: 9 shifted slice-multiplies, lane axis fully dense.
        acc = xw[0:RC, 0:WC] * dwf[0:1, :]                     # first tap inits acc
        for kh in range(3):
            for kw in range(3):
                if kh == 0 and kw == 0:
                    continue
                tap = kh * 3 + kw
                acc = acc + xw[kh:kh + RC, kw * C:kw * C + WC] * dwf[tap:tap + 1, :]

        # BN1 (scale folded into dwf) + ReLU.
        y = jnp.maximum(acc + b1, 0.0).astype(mxu_dtype)       # (RC, WC)

        if use_kron:
            # Pointwise 1x1 as a single MXU matmul against the block-diagonal
            # weight; activations never leave the lane-packed layout.
            z = jnp.dot(y, w2, preferred_element_type=jnp.float32)   # (RC, WCo)
        else:
            # Plain pointwise: per-width-column (RC, C) x (C, Cout) matmuls,
            # concatenated back to the lane-packed layout.  Exact FLOPs and a
            # tiny (C, Cout) weight -- used when the kron weight would blow VMEM.
            # TODO(synk): fold into one (RC*W, C) x (C, Cout) matmul once the
            # (RC, W*C)->(RC*W, C) in-kernel reshape is verified on Mosaic.
            cols = [jnp.dot(y[:, w * C:(w + 1) * C], w2,
                            preferred_element_type=jnp.float32)
                    for w in range(W)]
            z = jnp.concatenate(cols, axis=-1)                        # (RC, WCo)

        # BN2 (scale folded into w2) + ReLU; lane-dense (W*Cout) store.
        z = jnp.maximum(z + b2, 0.0)
        out_ref[0, r0:r0 + RC, :] = z.astype(out_ref.dtype)


def _fold_bn(gamma, beta, mean, var, eps=1e-5):
    scale = gamma / jnp.sqrt(var + eps)
    bias = beta - mean * scale
    return scale, bias


def dwconv_pwconv(x_nchw, dw_w, bn1, pw_w, bn2, *, stride=1, eps=1e-5,
                  act_dtype=jnp.bfloat16, mxu_dtype=jnp.bfloat16,
                  row_chunk=8, pw_mode="auto", nchw_output=True):
    """x_nchw: (N, C, H, W); dw_w: (C, 1, 3, 3); pw_w: (Cout, C, 1, 1);
    bn1/bn2: dicts with gamma/beta/mean/var (eval-mode BN). -> (N, Cout, H, W)."""
    assert stride == 1  # TODO(synk): stride=2 depthwise path not implemented.
    assert pw_mode in ("auto", "kron", "plain")
    N, C, H, W = x_nchw.shape
    Cout = pw_w.shape[0]

    WC = W * C
    WCo = W * Cout
    WC2 = (W + 2) * C
    WC2p = _round_up(WC2, 128)                 # lane-dense padded row width
    RC = row_chunk if H % row_chunk == 0 else H

    if pw_mode == "auto":
        # kron inflates the pointwise weight to (W*C, W*Cout); only worth it
        # while C is small and the weight stays a few hundred KiB VMEM-resident.
        kron_bytes = WC * WCo * jnp.dtype(mxu_dtype).itemsize
        use_kron = (C < 64) and (kron_bytes <= 2 * 1024 * 1024)
    else:
        use_kron = pw_mode == "kron"

    # ---- weight / bias prep: fold BN scales into the conv weights ----
    s1, b1 = _fold_bn(bn1["gamma"], bn1["beta"], bn1["mean"], bn1["var"], eps)
    s2, b2 = _fold_bn(bn2["gamma"], bn2["beta"], bn2["mean"], bn2["var"], eps)

    dws = jnp.transpose(dw_w[:, 0, :, :], (1, 2, 0)).astype(jnp.float32)
    dws = dws * s1[None, None, :].astype(jnp.float32)                 # (3,3,C)
    dw_flat = jnp.tile(dws.reshape(9, C), (1, W))                     # (9, W*C)
    b1_flat = jnp.tile(b1.reshape(1, C).astype(jnp.float32), (1, W))  # (1, W*C)

    pws = jnp.transpose(pw_w[:, :, 0, 0], (1, 0)).astype(jnp.float32)
    pws = pws * s2[None, :].astype(jnp.float32)                       # (C, Cout)
    if use_kron:
        w2 = jnp.kron(jnp.eye(W, dtype=jnp.float32), pws).astype(mxu_dtype)
    else:
        w2 = pws.astype(mxu_dtype)
    b2_flat = jnp.tile(b2.reshape(1, Cout).astype(jnp.float32), (1, W))  # (1, W*Cout)

    # ---- input prep: NCHW -> lane-packed, zero-padded rows.  A whole padded
    # image is one pipeline block, so there is NO halo duplication and NO
    # wrapper-side gather; the lane width is padded up to a multiple of 128.
    # TODO(synk): for H too large for a whole-image block, add a manual
    # double-buffered halo DMA path (memory_space=pl.ANY + make_async_copy).
    x_nhwc = jnp.transpose(x_nchw, (0, 2, 3, 1))
    x_pad = jnp.pad(x_nhwc, ((0, 0), (1, 1), (1, 1), (0, 0)))
    x_pad = x_pad.reshape(N, H + 2, WC2)
    if WC2p != WC2:
        x_pad = jnp.pad(x_pad, ((0, 0), (0, 0), (0, WC2p - WC2)))
    x_pad = x_pad.astype(act_dtype)            # bf16 input halves HBM read bytes

    kernel = functools.partial(_dw_pw_kernel, H=H, RC=RC, W=W, C=C, Cout=Cout,
                               use_kron=use_kron, mxu_dtype=mxu_dtype)

    out_flat = pl.pallas_call(
        kernel,
        out_shape=jax.ShapeDtypeStruct((N, H, WCo), x_nchw.dtype),
        grid_spec=pltpu.PrefetchScalarGridSpec(
            num_scalar_prefetch=0,
            grid=(N,),   # one whole image per step; N>=2 keeps both v7x TCs busy
            in_specs=[
                pl.BlockSpec((1, H + 2, WC2p), lambda n: (n, 0, 0)),
                pl.BlockSpec((9, WC), lambda n: (0, 0)),
                pl.BlockSpec((1, WC), lambda n: (0, 0)),
                pl.BlockSpec(w2.shape, lambda n: (0, 0)),
                pl.BlockSpec((1, WCo), lambda n: (0, 0)),
            ],
            out_specs=pl.BlockSpec((1, H, WCo), lambda n: (n, 0, 0)),
        ),
        compiler_params=pltpu.CompilerParams(
            dimension_semantics=("parallel",),
            # TODO(synk): re-derive per chip (v7x has only 64 MiB VMEM per TC).
            vmem_limit_bytes=64 * 1024 * 1024,
        ),
    )(x_pad, dw_flat, b1_flat, w2, b2_flat)

    out_nhwc = out_flat.reshape(N, H, W, Cout)
    if not nchw_output:
        return out_nhwc
    # TODO(synk): skip this full-tensor transpose (and emit bf16) when the
    # downstream consumer accepts NHWC / lane-packed activations.
    return jnp.transpose(out_nhwc, (0, 3, 1, 2))


def _reference(x_nchw, dw_w, bn1, pw_w, bn2, eps=1e-5):
    """Pure-JAX reference mirroring PyTorch (eval-mode BN) for validation."""
    C = x_nchw.shape[1]
    dn = ("NCHW", "OIHW", "NCHW")
    out = lax.conv_general_dilated(
        x_nchw.astype(jnp.float32), dw_w.astype(jnp.float32),
        window_strides=(1, 1), padding=((1, 1), (1, 1)),
        dimension_numbers=dn, feature_group_count=C)
    s1, b1 = _fold_bn(bn1["gamma"], bn1["beta"], bn1["mean"], bn1["var"], eps)
    out = jnp.maximum(out * s1[None, :, None, None] + b1[None, :, None, None], 0.0)
    out = lax.conv_general_dilated(
        out, pw_w.astype(jnp.float32),
        window_strides=(1, 1), padding=((0, 0), (0, 0)),
        dimension_numbers=dn)
    s2, b2 = _fold_bn(bn2["gamma"], bn2["beta"], bn2["mean"], bn2["var"], eps)
    out = jnp.maximum(out * s2[None, :, None, None] + b2[None, :, None, None], 0.0)
    return out


if __name__ == "__main__":
    N, C_in, C_out, H, W = 2, 16, 32, 16, 16

    key = jax.random.PRNGKey(0)
    k = jax.random.split(key, 11)

    x = jax.random.normal(k[0], (N, C_in, H, W), jnp.float32)
    dw_w = 0.2 * jax.random.normal(k[1], (C_in, 1, 3, 3), jnp.float32)
    pw_w = 0.2 * jax.random.normal(k[2], (C_out, C_in, 1, 1), jnp.float32)

    bn1 = dict(
        gamma=1.0 + 0.1 * jax.random.normal(k[3], (C_in,), jnp.float32),
        beta=0.1 * jax.random.normal(k[4], (C_in,), jnp.float32),
        mean=0.05 * jax.random.normal(k[5], (C_in,), jnp.float32),
        var=jnp.abs(jax.random.normal(k[6], (C_in,), jnp.float32)) + 0.5,
    )
    bn2 = dict(
        gamma=1.0 + 0.1 * jax.random.normal(k[7], (C_out,), jnp.float32),
        beta=0.1 * jax.random.normal(k[8], (C_out,), jnp.float32),
        mean=0.05 * jax.random.normal(k[9], (C_out,), jnp.float32),
        var=jnp.abs(jax.random.normal(k[10], (C_out,), jnp.float32)) + 0.5,
    )

    ref = jax.block_until_ready(_reference(x, dw_w, bn1, pw_w, bn2))

    # 1) f32 activations + f32 MXU, kron pointwise path (auto: C < 64). Tight check.
    out_f32 = jax.block_until_ready(dwconv_pwconv(
        x, dw_w, bn1, pw_w, bn2,
        act_dtype=jnp.float32, mxu_dtype=jnp.float32))
    np.testing.assert_allclose(np.asarray(out_f32), np.asarray(ref),
                               rtol=1e-4, atol=1e-4)

    # 2) plain (non-kron) pointwise path, f32: the path used at real MobileNet
    #    widths where the kron weight would not fit VMEM. Tight check.
    out_plain = jax.block_until_ready(dwconv_pwconv(
        x, dw_w, bn1, pw_w, bn2, pw_mode="plain",
        act_dtype=jnp.float32, mxu_dtype=jnp.float32))
    np.testing.assert_allclose(np.asarray(out_plain), np.asarray(ref),
                               rtol=1e-4, atol=1e-4)

    # 3) default deployment path: bf16 activations + bf16 MXU (f32 accumulation).
    out_bf16 = jax.block_until_ready(dwconv_pwconv(x, dw_w, bn1, pw_w, bn2))
    np.testing.assert_allclose(np.asarray(out_bf16), np.asarray(ref),
                               rtol=3e-2, atol=3e-2)

    print("KERNEL_OK")
</pallas_src>

<mosaic_0001>
module attributes {stable_mosaic.version = 11 : i64} {
  func.func @_dw_pw_kernel(%arg0: i32, %arg1: memref<1x18x384xf32, #tpu.memory_space<vmem>>, %arg2: memref<9x256xf32, #tpu.memory_space<vmem>>, %arg3: memref<1x256xf32, #tpu.memory_space<vmem>>, %arg4: memref<256x512xf32, #tpu.memory_space<vmem>>, %arg5: memref<1x512xf32, #tpu.memory_space<vmem>>, %arg6: memref<1x16x512xf32, #tpu.memory_space<vmem>>) attributes {dimension_semantics = [#tpu.dimension_semantics<parallel>], iteration_bounds = array<i64: 2>, scalar_prefetch = 0 : i64, scratch_operands = 0 : i64, tpu.core_type = #tpu.core_type<tc>, window_params = [{transform_indices = @transform_0, window_bounds = array<i64: 1, 18, 384>}, {pipeline_mode = #tpu.pipeline_mode<synchronous>, transform_indices = @transform_1, window_bounds = array<i64: 9, 256>}, {pipeline_mode = #tpu.pipeline_mode<synchronous>, transform_indices = @transform_2, window_bounds = array<i64: 1, 256>}, {pipeline_mode = #tpu.pipeline_mode<synchronous>, transform_indices = @transform_3, window_bounds = array<i64: 256, 512>}, {pipeline_mode = #tpu.pipeline_mode<synchronous>, transform_indices = @transform_4, window_bounds = array<i64: 1, 512>}, {transform_indices = @transform_5, window_bounds = array<i64: 1, 16, 512>}]} {
    %c0 = arith.constant 0 : index
    %c0_0 = arith.constant 0 : index
    %0 = vector.load %arg2[%c0, %c0_0] : memref<9x256xf32, #tpu.memory_space<vmem>>, vector<9x256xf32>
    %c0_1 = arith.constant 0 : index
    %c0_2 = arith.constant 0 : index
    %1 = vector.load %arg3[%c0_1, %c0_2] : memref<1x256xf32, #tpu.memory_space<vmem>>, vector<1x256xf32>
    %c0_3 = arith.constant 0 : index
    %c0_4 = arith.constant 0 : index
    %2 = vector.load %arg5[%c0_3, %c0_4] : memref<1x512xf32, #tpu.memory_space<vmem>>, vector<1x512xf32>
    %c0_5 = arith.constant 0 : index
    %c0_6 = arith.constant 0 : index
    %3 = vector.load %arg4[%c0_5, %c0_6] : memref<256x512xf32, #tpu.memory_space<vmem>>, vector<256x512xf32>
    %c0_7 = arith.constant 0 : index
    %c0_8 = arith.constant 0 : index
    %c0_9 = arith.constant 0 : index
    %4 = vector.load %arg1[%c0_7, %c0_8, %c0_9] : memref<1x18x384xf32, #tpu.memory_space<vmem>>, vector<1x10x384xf32>
    %5 = vector.shape_cast %4 : vector<1x10x384xf32> to vector<10x384xf32>
    %6 = vector.extract_strided_slice %5 {offsets = [0, 0], sizes = [8, 256], strides = [1, 1]} : vector<10x384xf32> to vector<8x256xf32>
    %7 = vector.extract_strided_slice %0 {offsets = [0, 0], sizes = [1, 256], strides = [1, 1]} : vector<9x256xf32> to vector<1x256xf32>
    %8 = vector.broadcast %7 : vector<1x256xf32> to vector<8x256xf32>
    %9 = arith.mulf %6, %8 : vector<8x256xf32>
    %10 = vector.extract_strided_slice %5 {offsets = [0, 16], sizes = [8, 256], strides = [1, 1]} : vector<10x384xf32> to vector<8x256xf32>
    %11 = vector.extract_strided_slice %0 {offsets = [1, 0], sizes = [1, 256], strides = [1, 1]} : vector<9x256xf32> to vector<1x256xf32>
    %12 = vector.broadcast %11 : vector<1x256xf32> to vector<8x256xf32>
    %13 = arith.mulf %10, %12 : vector<8x256xf32>
    %14 = arith.addf %9, %13 : vector<8x256xf32>
    %15 = vector.extract_strided_slice %5 {offsets = [0, 32], sizes = [8, 256], strides = [1, 1]} : vector<10x384xf32> to vector<8x256xf32>
    %16 = vector.extract_strided_slice %0 {offsets = [2, 0], sizes = [1, 256], strides = [1, 1]} : vector<9x256xf32> to vector<1x256xf32>
    %17 = vector.broadcast %16 : vector<1x256xf32> to vector<8x256xf32>
    %18 = arith.mulf %15, %17 : vector<8x256xf32>
    %19 = arith.addf %14, %18 : vector<8x256xf32>
    %20 = vector.extract_strided_slice %5 {offsets = [1, 0], sizes = [8, 256], strides = [1, 1]} : vector<10x384xf32> to vector<8x256xf32>
    %21 = vector.extract_strided_slice %0 {offsets = [3, 0], sizes = [1, 256], strides = [1, 1]} : vector<9x256xf32> to vector<1x256xf32>
    %22 = vector.broadcast %21 : vector<1x256xf32> to vector<8x256xf32>
    %23 = arith.mulf %20, %22 : vector<8x256xf32>
    %24 = arith.addf %19, %23 : vector<8x256xf32>
    %25 = vector.extract_strided_slice %5 {offsets = [1, 16], sizes = [8, 256], strides = [1, 1]} : vector<10x384xf32> to vector<8x256xf32>
    %26 = vector.extract_strided_slice %0 {offsets = [4, 0], sizes = [1, 256], strides = [1, 1]} : vector<9x256xf32> to vector<1x256xf32>
    %27 = vector.broadcast %26 : vector<1x256xf32> to vector<8x256xf32>
    %28 = arith.mulf %25, %27 : vector<8x256xf32>
    %29 = arith.addf %24, %28 : vector<8x256xf32>
    %30 = vector.extract_strided_slice %5 {offsets = [1, 32], sizes = [8, 256], strides = [1, 1]} : vector<10x384xf32> to vector<8x256xf32>
    %31 = vector.extract_strided_slice %0 {offsets = [5, 0], sizes = [1, 256], strides = [1, 1]} : vector<9x256xf32> to vector<1x256xf32>
    %32 = vector.broadcast %31 : vector<1x256xf32> to vector<8x256xf32>
    %33 = arith.mulf %30, %32 : vector<8x256xf32>
    %34 = arith.addf %29, %33 : vector<8x256xf32>
    %35 = vector.extract_strided_slice %5 {offsets = [2, 0], sizes = [8, 256], strides = [1, 1]} : vector<10x384xf32> to vector<8x256xf32>
    %36 = vector.extract_strided_slice %0 {offsets = [6, 0], sizes = [1, 256], strides = [1, 1]} : vector<9x256xf32> to vector<1x256xf32>
    %37 = vector.broadcast %36 : vector<1x256xf32> to vector<8x256xf32>
    %38 = arith.mulf %35, %37 : vector<8x256xf32>
    %39 = arith.addf %34, %38 : vector<8x256xf32>
    %40 = vector.extract_strided_slice %5 {offsets = [2, 16], sizes = [8, 256], strides = [1, 1]} : vector<10x384xf32> to vector<8x256xf32>
    %41 = vector.extract_strided_slice %0 {offsets = [7, 0], sizes = [1, 256], strides = [1, 1]} : vector<9x256xf32> to vector<1x256xf32>
    %42 = vector.broadcast %41 : vector<1x256xf32> to vector<8x256xf32>
    %43 = arith.mulf %40, %42 : vector<8x256xf32>
    %44 = arith.addf %39, %43 : vector<8x256xf32>
    %45 = vector.extract_strided_slice %5 {offsets = [2, 32], sizes = [8, 256], strides = [1, 1]} : vector<10x384xf32> to vector<8x256xf32>
    %46 = vector.extract_strided_slice %0 {offsets = [8, 0], sizes = [1, 256], strides = [1, 1]} : vector<9x256xf32> to vector<1x256xf32>
    %47 = vector.broadcast %46 : vector<1x256xf32> to vector<8x256xf32>
    %48 = arith.mulf %45, %47 : vector<8x256xf32>
    %49 = arith.addf %44, %48 : vector<8x256xf32>
    %50 = vector.broadcast %1 : vector<1x256xf32> to vector<8x256xf32>
    %51 = arith.addf %49, %50 : vector<8x256xf32>
    %cst = arith.constant 0.000000e+00 : f32
    %52 = vector.broadcast %cst : f32 to vector<8x256xf32>
    %53 = arith.maximumf %51, %52 : vector<8x256xf32>
    %cst_10 = arith.constant dense<0.000000e+00> : vector<8x512xf32>
    %54 = tpu.matmul %53, %3, %cst_10 {dimension_numbers = #tpu.dot_dimension_numbers<[1], [0], [0], [1], [0, 0, 1, 1], [], []>} : vector<8x256xf32>, vector<256x512xf32>, vector<8x512xf32> -> vector<8x512xf32>
    %55 = vector.broadcast %2 : vector<1x512xf32> to vector<8x512xf32>
    %56 = arith.addf %54, %55 : vector<8x512xf32>
    %cst_11 = arith.constant 0.000000e+00 : f32
    %57 = vector.broadcast %cst_11 : f32 to vector<8x512xf32>
    %58 = arith.maximumf %56, %57 : vector<8x512xf32>
    %c0_12 = arith.constant 0 : index
    %c0_13 = arith.constant 0 : index
    %c0_14 = arith.constant 0 : index
    %59 = vector.load %arg6[%c0_12, %c0_13, %c0_14] : memref<1x16x512xf32, #tpu.memory_space<vmem>>, vector<1x8x512xf32>
    %60 = vector.shape_cast %59 : vector<1x8x512xf32> to vector<8x512xf32>
    %61 = vector.shape_cast %58 : vector<8x512xf32> to vector<1x8x512xf32>
    tpu.vector_store %arg6[%c0_12, %c0_13, %c0_14], %61 {strides = array<i32>} : memref<1x16x512xf32, #tpu.memory_space<vmem>>, vector<1x8x512xf32>,
    %c0_15 = arith.constant 0 : index
    %c8 = arith.constant 8 : index
    %c0_16 = arith.constant 0 : index
    %62 = vector.load %arg1[%c0_15, %c8, %c0_16] : memref<1x18x384xf32, #tpu.memory_space<vmem>>, vector<1x10x384xf32>
    %63 = vector.shape_cast %62 : vector<1x10x384xf32> to vector<10x384xf32>
    %64 = vector.extract_strided_slice %63 {offsets = [0, 0], sizes = [8, 256], strides = [1, 1]} : vector<10x384xf32> to vector<8x256xf32>
    %65 = vector.extract_strided_slice %0 {offsets = [0, 0], sizes = [1, 256], strides = [1, 1]} : vector<9x256xf32> to vector<1x256xf32>
    %66 = vector.broadcast %65 : vector<1x256xf32> to vector<8x256xf32>
    %67 = arith.mulf %64, %66 : vector<8x256xf32>
    %68 = vector.extract_strided_slice %63 {offsets = [0, 16], sizes = [8, 256], strides = [1, 1]} : vector<10x384xf32> to vector<8x256xf32>
    %69 = vector.extract_strided_slice %0 {offsets = [1, 0], sizes = [1, 256], strides = [1, 1]} : vector<9x256xf32> to vector<1x256xf32>
    %70 = vector.broadcast %69 : vector<1x256xf32> to vector<8x256xf32>
    %71 = arith.mulf %68, %70 : vector<8x256xf32>
    %72 = arith.addf %67, %71 : vector<8x256xf32>
    %73 = vector.extract_strided_slice %63 {offsets = [0, 32], sizes = [8, 256], strides = [1, 1]} : vector<10x384xf32> to vector<8x256xf32>
    %74 = vector.extract_strided_slice %0 {offsets = [2, 0], sizes = [1, 256], strides = [1, 1]} : vector<9x256xf32> to vector<1x256xf32>
    %75 = vector.broadcast %74 : vector<1x256xf32> to vector<8x256xf32>
    %76 = arith.mulf %73, %75 : vector<8x256xf32>
    %77 = arith.addf %72, %76 : vector<8x256xf32>
    %78 = vector.extract_strided_slice %63 {offsets = [1, 0], sizes = [8, 256], strides = [1, 1]} : vector<10x384xf32> to vector<8x256xf32>
    %79 = vector.extract_strided_slice %0 {offsets = [3, 0], sizes = [1, 256], strides = [1, 1]} : vector<9x256xf32> to vector<1x256xf32>
    %80 = vector.broadcast %79 : vector<1x256xf32> to vector<8x256xf32>
    %81 = arith.mulf %78, %80 : vector<8x256xf32>
    %82 = arith.addf %77, %81 : vector<8x256xf32>
    %83 = vector.extract_strided_slice %63 {offsets = [1, 16], sizes = [8, 256], strides = [1, 1]} : vector<10x384xf32> to vector<8x256xf32>
    %84 = vector.extract_strided_slice %0 {offsets = [4, 0], sizes = [1, 256], strides = [1, 1]} : vector<9x256xf32> to vector<1x256xf32>
    %85 = vector.broadcast %84 : vector<1x256xf32> to vector<8x256xf32>
    %86 = arith.mulf %83, %85 : vector<8x256xf32>
    %87 = arith.addf %82, %86 : vector<8x256xf32>
    %88 = vector.extract_strided_slice %63 {offsets = [1, 32], sizes = [8, 256], strides = [1, 1]} : vector<10x384xf32> to vector<8x256xf32>
    %89 = vector.extract_strided_slice %0 {offsets = [5, 0], sizes = [1, 256], strides = [1, 1]} : vector<9x256xf32> to vector<1x256xf32>
    %90 = vector.broadcast %89 : vector<1x256xf32> to vector<8x256xf32>
    %91 = arith.mulf %88, %90 : vector<8x256xf32>
    %92 = arith.addf %87, %91 : vector<8x256xf32>
    %93 = vector.extract_strided_slice %63 {offsets = [2, 0], sizes = [8, 256], strides = [1, 1]} : vector<10x384xf32> to vector<8x256xf32>
    %94 = vector.extract_strided_slice %0 {offsets = [6, 0], sizes = [1, 256], strides = [1, 1]} : vector<9x256xf32> to vector<1x256xf32>
    %95 = vector.broadcast %94 : vector<1x256xf32> to vector<8x256xf32>
    %96 = arith.mulf %93, %95 : vector<8x256xf32>
    %97 = arith.addf %92, %96 : vector<8x256xf32>
    %98 = vector.extract_strided_slice %63 {offsets = [2, 16], sizes = [8, 256], strides = [1, 1]} : vector<10x384xf32> to vector<8x256xf32>
    %99 = vector.extract_strided_slice %0 {offsets = [7, 0], sizes = [1, 256], strides = [1, 1]} : vector<9x256xf32> to vector<1x256xf32>
    %100 = vector.broadcast %99 : vector<1x256xf32> to vector<8x256xf32>
    %101 = arith.mulf %98, %100 : vector<8x256xf32>
    %102 = arith.addf %97, %101 : vector<8x256xf32>
    %103 = vector.extract_strided_slice %63 {offsets = [2, 32], sizes = [8, 256], strides = [1, 1]} : vector<10x384xf32> to vector<8x256xf32>
    %104 = vector.extract_strided_slice %0 {offsets = [8, 0], sizes = [1, 256], strides = [1, 1]} : vector<9x256xf32> to vector<1x256xf32>
    %105 = vector.broadcast %104 : vector<1x256xf32> to vector<8x256xf32>
    %106 = arith.mulf %103, %105 : vector<8x256xf32>
    %107 = arith.addf %102, %106 : vector<8x256xf32>
    %108 = vector.broadcast %1 : vector<1x256xf32> to vector<8x256xf32>
    %109 = arith.addf %107, %108 : vector<8x256xf32>
    %cst_17 = arith.constant 0.000000e+00 : f32
    %110 = vector.broadcast %cst_17 : f32 to vector<8x256xf32>
    %111 = arith.maximumf %109, %110 : vector<8x256xf32>
    %cst_18 = arith.constant dense<0.000000e+00> : vector<8x512xf32>
    %112 = tpu.matmul %111, %3, %cst_18 {dimension_numbers = #tpu.dot_dimension_numbers<[1], [0], [0], [1], [0, 0, 1, 1], [], []>} : vector<8x256xf32>, vector<256x512xf32>, vector<8x512xf32> -> vector<8x512xf32>
    %113 = vector.broadcast %2 : vector<1x512xf32> to vector<8x512xf32>
    %114 = arith.addf %112, %113 : vector<8x512xf32>
    %cst_19 = arith.constant 0.000000e+00 : f32
    %115 = vector.broadcast %cst_19 : f32 to vector<8x512xf32>
    %116 = arith.maximumf %114, %115 : vector<8x512xf32>
    %c0_20 = arith.constant 0 : index
    %c8_21 = arith.constant 8 : index
    %c0_22 = arith.constant 0 : index
    %117 = vector.load %arg6[%c0_20, %c8_21, %c0_22] : memref<1x16x512xf32, #tpu.memory_space<vmem>>, vector<1x8x512xf32>
    %118 = vector.shape_cast %117 : vector<1x8x512xf32> to vector<8x512xf32>
    %119 = vector.shape_cast %116 : vector<8x512xf32> to vector<1x8x512xf32>
    tpu.vector_store %arg6[%c0_20, %c8_21, %c0_22], %119 {strides = array<i32>} : memref<1x16x512xf32, #tpu.memory_space<vmem>>, vector<1x8x512xf32>,
    return
  }
  func.func @transform_0(%arg0: i32) -> (i32, i32, i32) {
    %c0_i32 = arith.constant 0 : i32
    %c0_i32_0 = arith.constant 0 : i32
    %c0_i32_1 = arith.constant 0 : i32
    return %arg0, %c0_i32, %c0_i32_0 : i32, i32, i32
  }
  func.func @transform_1(%arg0: i32) -> (i32, i32) {
    %c0_i32 = arith.constant 0 : i32
    %c0_i32_0 = arith.constant 0 : i32
    %c0_i32_1 = arith.constant 0 : i32
    return %c0_i32, %c0_i32_0 : i32, i32
  }
  func.func @transform_2(%arg0: i32) -> (i32, i32) {
    %c0_i32 = arith.constant 0 : i32
    %c0_i32_0 = arith.constant 0 : i32
    %c0_i32_1 = arith.constant 0 : i32
    return %c0_i32, %c0_i32_0 : i32, i32
  }
  func.func @transform_3(%arg0: i32) -> (i32, i32) {
    %c0_i32 = arith.constant 0 : i32
    %c0_i32_0 = arith.constant 0 : i32
    %c0_i32_1 = arith.constant 0 : i32
    return %c0_i32, %c0_i32_0 : i32, i32
  }
  func.func @transform_4(%arg0: i32) -> (i32, i32) {
    %c0_i32 = arith.constant 0 : i32
    %c0_i32_0 = arith.constant 0 : i32
    %c0_i32_1 = arith.constant 0 : i32
    return %c0_i32, %c0_i32_0 : i32, i32
  }
  func.func @transform_5(%arg0: i32) -> (i32, i32, i32) {
    %c0_i32 = arith.constant 0 : i32
    %c0_i32_0 = arith.constant 0 : i32
    %c0_i32_1 = arith.constant 0 : i32
    return %arg0, %c0_i32, %c0_i32_0 : i32, i32, i32
  }
}

</mosaic_0001>

<llo_original>
// kernel: tpu_custom_call.1
$region0: #{tpu_custom_call.1}
  #allocation0 [shape = 'u32[]', space=smem, size = 0x4, offset = 0x4, fixed_abs, tag = 'smem constant byte address 0x4 - core index']
  #allocation1 [shape = 'u32[144,128]{1,0:T(1,128)}', space=vmem, size = 0x12000, scoped, tag = 'internal scratch']
  %s0 = inlined_call_operand.hbm [shape: f32[2,18,384], index: 0, kind: input, shape index: {}]
  %s1 = inlined_call_operand.hbm [shape: f32[9,256], index: 1, kind: input, shape index: {}]
  %s2 = inlined_call_operand.hbm [shape: f32[1,256], index: 2, kind: input, shape index: {}]
  %s3 = inlined_call_operand.hbm [shape: f32[256,512], index: 3, kind: input, shape index: {}]
  %s4 = inlined_call_operand.hbm [shape: f32[1,512], index: 4, kind: input, shape index: {}]
  %s5 = inlined_call_operand.hbm [shape: f32[2,16,512], index: 5, kind: output, shape index: {}]
  %s6 = sld [smem:[#allocation0]]
  $region73: #{tpu_custom_call.1} parent=0
    _
  %s8 = ssub.s32 1, %s6
  %s9 = scalar_select 0, %s8, %s6
  $region1: #{tpu_custom_call.1} parent=0
    #allocation2 [shape = 'u8[73728]{0}', space=vmem, size = 0x12000, scoped, tag = 'input window, operand 0']
    #allocation3 [shape = 's32[2]{0}', space=sflag, size = 0x8, scoped, tag = 'scoped memory for tpu_custom_call.1']
    #allocation4 [shape = 's32[2]{0}', space=sflag, size = 0x8, scoped, tag = 'scoped memory for tpu_custom_call.1']
    #allocation5 [shape = 'u8[16384]{0}', space=vmem, size = 0x4000, scoped, tag = 'input window, operand 1, single buffered']
    #allocation6 [shape = 's32[1]{0}', space=sflag, size = 0x4, scoped, tag = 'scoped memory for tpu_custom_call.1']
    #allocation7 [shape = 'u8[1024]{0}', space=vmem, size = 0x400, scoped, tag = 'input window, operand 2, single buffered']
    #allocation8 [shape = 'u8[524288]{0}', space=vmem, size = 0x80000, scoped, tag = 'input window, operand 3, single buffered']
    #allocation9 [shape = 's32[1]{0}', space=sflag, size = 0x4, scoped, tag = 'scoped memory for tpu_custom_call.1']
    #allocation10 [shape = 'u8[2048]{0}', space=vmem, size = 0x800, scoped, tag = 'input window, operand 4, single buffered']
    #allocation11 [shape = 'u8[65536]{0}', space=vmem, size = 0x10000, scoped, tag = 'output window, operand 0']
    %10 = vsyncpa [#allocation3], 0
    %s11 = scalar_lea.sflag [#allocation3], 1
    %12 = vsyncpa %s11, 0
    %13 = vsyncpa [#allocation6], 0
    %14 = vsyncpa [#allocation9], 0
    %15 = vsyncpa [#allocation4], 0
    %s16 = scalar_lea.sflag [#allocation4], 1
    %17 = vsyncpa %s16, 0
    loop: start=0, step=1, limit=4
    $region2: #{tpu_custom_call.1} parent=1 // loop_pre_header
      _
    $region3: #{tpu_custom_call.1} parent=1 // loop_header
      %s19 = sphi 0, %s23
      %p20 = scmp.ge.s32.totalorder %s19, 4
      %s29 = sphi 0, %s31
      %s32 = sphi 0, %s29
      %s33 = sphi 0, %s32
      %s49 = sphi 0, %s33
      %s53 = sphi 0, %s53
      %s55 = sphi 0, %s53
      %s56 = sphi 0, %s55
      %s70 = sphi 0, %s56
      %s74 = sphi 0, %s74
      %s76 = sphi 0, %s74
      %s77 = sphi 0, %s76
      %s91 = sphi 0, %s77
      %s95 = sphi 0, %s95
      %s97 = sphi 0, %s95
      %s98 = sphi 0, %s97
      %s112 = sphi 0, %s98
      %s116 = sphi 0, %s116
      %s118 = sphi 0, %s116
      %s119 = sphi 0, %s118
      %s133 = sphi 0, %s119
      %s139 = sphi 0, %s141
      %s142 = sphi 0, %s139
      %s143 = sphi 0, %s142
      %s159 = sphi 0, %s143
    $region4: #{tpu_custom_call.1} parent=1 // loop_header_branch
      %22 = sbr.rel (%p20) target = $region8
    $region5: #{tpu_custom_call.1} parent=1 // loop_body
      %s24 = ssub.s32 %s19, 1
      %s25 = ssub.s32 %s19, 2
      %s26 = sadd.s32 %s19, 1
      %s27 = ssub.s32 %s19, %s26
      %p28 = scmp.eq.s32.totalorder %s27, 0
      %s30 = sadd.s32 %s29, 1
      %s31 = scalar_select %p28, %s29, %s30
      %p34 = pneg %p28
      %p35 = scmp.eq.s32.totalorder %s19, 1
      %p36 = por %p34, %p35
      %p37 = scmp.ne.s32.totalorder %s29, %s32
      %p38 = scmp.eq.s32.totalorder %s19, 0
      %p39 = por %p37, %p38
      %p40 = scmp.ne.s32.totalorder %s29, %s32
      %p41 = scmp.eq.s32.totalorder %s24, 1
      %p42 = por %p40, %p41
      %p43 = scmp.ne.s32.totalorder %s32, %s33
      %p44 = scmp.eq.s32.totalorder %s24, 0
      %p45 = por %p43, %p44
      %p46 = scmp.ne.s32.totalorder %s32, %s33
      %p47 = scmp.eq.s32.totalorder %s25, 1
      %p48 = por %p46, %p47
      %p50 = scmp.ne.s32.totalorder %s33, %s49
      %p51 = scmp.eq.s32.totalorder %s25, 0
      %p52 = por %p50, %p51
      %s54 = sadd.s32 %s53, 1
      %p57 = scmp.eq.s32.totalorder %s19, 1
      %p58 = scmp.ne.s32.totalorder %s53, %s55
      %p59 = scmp.eq.s32.totalorder %s19, 0
      %p60 = por %p58, %p59
      %p61 = scmp.ne.s32.totalorder %s53, %s55
      %p62 = scmp.eq.s32.totalorder %s24, 1
      %p63 = por %p61, %p62
      %p64 = scmp.ne.s32.totalorder %s55, %s56
      %p65 = scmp.eq.s32.totalorder %s24, 0
      %p66 = por %p64, %p65
      %p67 = scmp.ne.s32.totalorder %s55, %s56
      %p68 = scmp.eq.s32.totalorder %s25, 1
      %p69 = por %p67, %p68
      %p71 = scmp.ne.s32.totalorder %s56, %s70
      %p72 = scmp.eq.s32.totalorder %s25, 0
      %p73 = por %p71, %p72
      %s75 = sadd.s32 %s74, 1
      %p78 = scmp.eq.s32.totalorder %s19, 1
      %p79 = scmp.ne.s32.totalorder %s74, %s76
      %p80 = scmp.eq.s32.totalorder %s19, 0
      %p81 = por %p79, %p80
      %p82 = scmp.ne.s32.totalorder %s74, %s76
      %p83 = scmp.eq.s32.totalorder %s24, 1
      %p84 = por %p82, %p83
      %p85 = scmp.ne.s32.totalorder %s76, %s77
      %p86 = scmp.eq.s32.totalorder %s24, 0
      %p87 = por %p85, %p86
      %p88 = scmp.ne.s32.totalorder %s76, %s77
      %p89 = scmp.eq.s32.totalorder %s25, 1
      %p90 = por %p88, %p89
      %p92 = scmp.ne.s32.totalorder %s77, %s91
      %p93 = scmp.eq.s32.totalorder %s25, 0
      %p94 = por %p92, %p93
      %s96 = sadd.s32 %s95, 1
      %p99 = scmp.eq.s32.totalorder %s19, 1
      %p100 = scmp.ne.s32.totalorder %s95, %s97
      %p101 = scmp.eq.s32.totalorder %s19, 0
      %p102 = por %p100, %p101
      %p103 = scmp.ne.s32.totalorder %s95, %s97
      %p104 = scmp.eq.s32.totalorder %s24, 1
      %p105 = por %p103, %p104
      %p106 = scmp.ne.s32.totalorder %s97, %s98
      %p107 = scmp.eq.s32.totalorder %s24, 0
      %p108 = por %p106, %p107
      %p109 = scmp.ne.s32.totalorder %s97, %s98
      %p110 = scmp.eq.s32.totalorder %s25, 1
      %p111 = por %p109, %p110
      %p113 = scmp.ne.s32.totalorder %s98, %s112
      %p114 = scmp.eq.s32.totalorder %s25, 0
      %p115 = por %p113, %p114
      %s117 = sadd.s32 %s116, 1
      %p120 = scmp.eq.s32.totalorder %s19, 1
      %p121 = scmp.ne.s32.totalorder %s116, %s118
      %p122 = scmp.eq.s32.totalorder %s19, 0
      %p123 = por %p121, %p122
      %p124 = scmp.ne.s32.totalorder %s116, %s118
      %p125 = scmp.eq.s32.totalorder %s24, 1
      %p126 = por %p124, %p125
      %p127 = scmp.ne.s32.totalorder %s118, %s119
      %p128 = scmp.eq.s32.totalorder %s24, 0
      %p129 = por %p127, %p128
      %p130 = scmp.ne.s32.totalorder %s118, %s119
      %p131 = scmp.eq.s32.totalorder %s25, 1
      %p132 = por %p130, %p131
      %p134 = scmp.ne.s32.totalorder %s119, %s133
      %p135 = scmp.eq.s32.totalorder %s25, 0
      %p136 = por %p134, %p135
      %s137 = ssub.s32 %s19, %s26
      %p138 = scmp.eq.s32.totalorder %s137, 0
      %s140 = sadd.s32 %s139, 1
      %s141 = scalar_select %p138, %s139, %s140
      %p144 = pneg %p138
      %p145 = scmp.eq.s32.totalorder %s19, 1
      %p146 = por %p144, %p145
      %p147 = scmp.ne.s32.totalorder %s139, %s142
      %p148 = scmp.eq.s32.totalorder %s19, 0
      %p149 = por %p147, %p148
      %p150 = scmp.ne.s32.totalorder %s139, %s142
      %p151 = scmp.eq.s32.totalorder %s24, 1
      %p152 = por %p150, %p151
      %p153 = scmp.ne.s32.totalorder %s142, %s143
      %p154 = scmp.eq.s32.totalorder %s24, 0
      %p155 = por %p153, %p154
      %p156 = scmp.ne.s32.totalorder %s142, %s143
      %p157 = scmp.eq.s32.totalorder %s25, 1
      %p158 = por %p156, %p157
      %p160 = scmp.ne.s32.totalorder %s143, %s159
      %p161 = scmp.eq.s32.totalorder %s25, 0
      %p162 = por %p160, %p161
      %p163 = scmp.le.s32.totalorder 1, %s19
      %p164 = scmp.lt.s32.totalorder %s19, 3
      %p165 = pnand %p163, %p164
      %p166 = pneg %p165
      // Predicated region
      $region9: #{tpu_custom_call.1} parent=5 // pred_check
        _
      $region10: #{tpu_custom_call.1} parent=5 // pred_check_branch
        %168 = sbr.rel (%p165) target = $region12
      $region11: #{tpu_custom_call.1} parent=5 // pred_region
        %s169 = ssub.s32 %s19, 1
        // Predicated region
        $region13: #{tpu_custom_call.1} parent=11 // pred_check
          %p170 = pneg %p66
        $region14: #{tpu_custom_call.1} parent=11 // pred_check_branch
          %172 = sbr.rel (%p170) target = $region16
        $region15: #{tpu_custom_call.1} parent=11 // pred_region
          %s174 = ssub.s32 512, 512
          %175 = vsyncadd [#allocation6], %s174
          %s176 = sshll.u32 [#allocation5], 4
          %s177 = int_to_ptr.vmem [resolvable:$true] %s176
          %182 = dma.hbm_to_vmem [thread:$0]  %s1, 512, %s177, [#allocation6], 256, 256, 16
        $region16: #{tpu_custom_call.1} parent=11 // pred_fallthru
          _
        // Predicated region
        $region17: #{tpu_custom_call.1} parent=11 // pred_check
          %p183 = pneg %p87
        $region18: #{tpu_custom_call.1} parent=11 // pred_check_branch
          %185 = sbr.rel (%p183) target = $region20
        $region19: #{tpu_custom_call.1} parent=11 // pred_region
          %s187 = ssub.s32 32, 32
          %188 = vsyncadd [#allocation6], %s187
          %s190 = sshll.u32 [#allocation7], 4
          %s191 = int_to_ptr.vmem [resolvable:$true] %s190
          %193 = dma.hbm_to_vmem [thread:$0]  %s2, 32, %s191, [#allocation6]
        $region20: #{tpu_custom_call.1} parent=11 // pred_fallthru
          _
        // Predicated region
        $region21: #{tpu_custom_call.1} parent=11 // pred_check
          %p194 = pneg %p108
        $region22: #{tpu_custom_call.1} parent=11 // pred_check_branch
          %196 = sbr.rel (%p194) target = $region24
        $region23: #{tpu_custom_call.1} parent=11 // pred_region
          %s198 = ssub.s32 16384, 16384
          %199 = vsyncadd [#allocation9], %s198
          %s200 = sshll.u32 [#allocation8], 4
          %s201 = int_to_ptr.vmem [resolvable:$true] %s200
          %206 = dma.hbm_to_vmem [thread:$0]  %s3, 16384, %s201, [#allocation9], 512, 512, 32
        $region24: #{tpu_custom_call.1} parent=11 // pred_fallthru
          _
        // Predicated region
        $region25: #{tpu_custom_call.1} parent=11 // pred_check
          %p207 = pneg %p129
        $region26: #{tpu_custom_call.1} parent=11 // pred_check_branch
          %209 = sbr.rel (%p207) target = $region28
        $region27: #{tpu_custom_call.1} parent=11 // pred_region
          %s211 = ssub.s32 64, 64
          %212 = vsyncadd [#allocation9], %s211
          %s214 = sshll.u32 [#allocation10], 4
          %s215 = int_to_ptr.vmem [resolvable:$true] %s214
          %217 = dma.hbm_to_vmem [thread:$0]  %s4, 64, %s215, [#allocation9]
        $region28: #{tpu_custom_call.1} parent=11 // pred_fallthru
          _
      $region12: #{tpu_custom_call.1} parent=5 // pred_fallthru
        _
      %p218 = scmp.lt.s32.totalorder %s19, 2
      // Predicated region
      $region29: #{tpu_custom_call.1} parent=5 // pred_check
        %p219 = pneg %p218
      $region30: #{tpu_custom_call.1} parent=5 // pred_check_branch
        %221 = sbr.rel (%p219) target = $region32
      $region31: #{tpu_custom_call.1} parent=5 // pred_region
        // Predicated region
        $region33: #{tpu_custom_call.1} parent=31 // pred_check
          %p222 = pneg %p39
        $region34: #{tpu_custom_call.1} parent=31 // pred_check_branch
          %224 = sbr.rel (%p222) target = $region36
        $region35: #{tpu_custom_call.1} parent=31 // pred_region
          %s225 = sand.u32 %s29, 1
          %s226 = scalar_lea.sflag [#allocation3], %s225
          %s227 = sand.u32 %s29, 1
          %s228 = smul.addr %s227, 72
          %s229 = scalar_lea.vmem [#allocation2], %s228
          %s231 = ssub.s32 1152, 1152
          %232 = vsyncadd %s226, %s231
          %s233 = smul.addr %s19, 9
          %s234 = smul.addr %s233, 128
          %s235 = scalar_lea.hbm %s0, %s234
          %s236 = sshll.u32 %s229, 4
          %s237 = int_to_ptr.vmem [resolvable:$true] %s236
          %242 = dma.hbm_to_vmem [thread:$0]  %s235, 1152, %s237, %s226, 384, 384, 24
        $region36: #{tpu_custom_call.1} parent=31 // pred_fallthru
          _
      $region32: #{tpu_custom_call.1} parent=5 // pred_fallthru
        _
      %p243 = scmp.le.s32.totalorder 1, %s19
      %p244 = scmp.lt.s32.totalorder %s19, 3
      %p245 = pnand %p243, %p244
      %p246 = pneg %p245
      // Predicated region
      $region37: #{tpu_custom_call.1} parent=5 // pred_check
        _
      $region38: #{tpu_custom_call.1} parent=5 // pred_check_branch
        %248 = sbr.rel (%p245) target = $region40
      $region39: #{tpu_custom_call.1} parent=5 // pred_region
        %s249 = ssub.s32 %s19, 1
        %s250 = sand.u32 %s32, 1
        %s251 = scalar_lea.sflag [#allocation3], %s250
        %s252 = sand.u32 %s32, 1
        %s253 = smul.addr %s252, 72
        %s254 = scalar_lea.vmem [#allocation2], %s253
        // Predicated region
        $region41: #{tpu_custom_call.1} parent=39 // pred_check
          %p255 = pneg %p45
        $region42: #{tpu_custom_call.1} parent=39 // pred_check_branch
          %257 = sbr.rel (%p255) target = $region44
        $region43: #{tpu_custom_call.1} parent=39 // pred_region
          %258 = dma.done %s251, 1152
        $region44: #{tpu_custom_call.1} parent=39 // pred_fallthru
          _
        // Predicated region
        $region45: #{tpu_custom_call.1} parent=39 // pred_check
          %p259 = pneg %p66
        $region46: #{tpu_custom_call.1} parent=39 // pred_check_branch
          %261 = sbr.rel (%p259) target = $region48
        $region47: #{tpu_custom_call.1} parent=39 // pred_region
          %262 = dma.done [#allocation6], 512
        $region48: #{tpu_custom_call.1} parent=39 // pred_fallthru
          _
        // Predicated region
        $region49: #{tpu_custom_call.1} parent=39 // pred_check
          %p263 = pneg %p87
        $region50: #{tpu_custom_call.1} parent=39 // pred_check_branch
          %265 = sbr.rel (%p263) target = $region52
        $region51: #{tpu_custom_call.1} parent=39 // pred_region
          %266 = dma.done [#allocation6], 32
        $region52: #{tpu_custom_call.1} parent=39 // pred_fallthru
          _
        // Predicated region
        $region53: #{tpu_custom_call.1} parent=39 // pred_check
          %p267 = pneg %p108
        $region54: #{tpu_custom_call.1} parent=39 // pred_check_branch
          %269 = sbr.rel (%p267) target = $region56
        $region55: #{tpu_custom_call.1} parent=39 // pred_region
          %270 = dma.done [#allocation9], 16384
        $region56: #{tpu_custom_call.1} parent=39 // pred_fallthru
          _
        // Predicated region
        $region57: #{tpu_custom_call.1} parent=39 // pred_check
          %p271 = pneg %p129
        $region58: #{tpu_custom_call.1} parent=39 // pred_check_branch
          %273 = sbr.rel (%p271) target = $region60
        $region59: #{tpu_custom_call.1} parent=39 // pred_region
          %274 = dma.done [#allocation9], 64
        $region60: #{tpu_custom_call.1} parent=39 // pred_fallthru
          _
        %s275 = sand.u32 %s32, 1
        %s276 = scalar_lea.sflag [#allocation3], %s275
        %s277 = sand.u32 %s32, 1
        %s278 = smul.addr %s277, 72
        %s279 = scalar_lea.vmem [#allocation2], %s278
        %p280 = pneg %p45
        %p281 = pneg %p42
        %p282 = pneg %p66
        %p283 = pneg %p63
        %p284 = pneg %p87
        %p285 = pneg %p84
        %p286 = pneg %p108
        %p287 = pneg %p105
        %p288 = pneg %p129
        %p289 = pneg %p126
        %p290 = pneg %p155
        %p291 = pneg %p152
        %s292 = sand.u32 %s142, 1
        %s293 = scalar_lea.sflag [#allocation4], %s292
        %s294 = sand.u32 %s142, 1
        %s295 = smul.addr %s294, 64
        %s296 = scalar_lea.vmem [#allocation11], %s295
        %v297 = vld [vmem:[#allocation5] sm:$0xff]
        %v298 = vld [vmem:[#allocation5 + $0x8] sm:$0xff]
        %v299 = vld [vmem:[#allocation5 + $0x10] sm:$0x1]
        %v300 = vld [vmem:[#allocation5 + $0x18] sm:$0x1]
        %v301 = vld [vmem:[#allocation7] sm:$0x3]
        %v302 = vld [vmem:[#allocation10] sm:$0xf]
        %v303 = vld [vmem:[#allocation8] sm:$0xff]
        %v304 = vld [vmem:[#allocation8 + $0x8] sm:$0xff]
        %v305 = vld [vmem:[#allocation8 + $0x10] sm:$0xff]
        %v306 = vld [vmem:[#allocation8 + $0x18] sm:$0xff]
        %v307 = vld [vmem:[#allocation8 + $0x20] sm:$0xff]
        %v308 = vld [vmem:[#allocation8 + $0x28] sm:$0xff]
        %v309 = vld [vmem:[#allocation8 + $0x30] sm:$0xff]
        %v310 = vld [vmem:[#allocation8 + $0x38] sm:$0xff]
        %v311 = vld [vmem:[#allocation8 + $0x40] sm:$0xff]
        %v312 = vld [vmem:[#allocation8 + $0x48] sm:$0xff]
        %v313 = vld [vmem:[#allocation8 + $0x50] sm:$0xff]
        %v314 = vld [vmem:[#allocation8 + $0x58] sm:$0xff]
        %v315 = vld [vmem:[#allocation8 + $0x60] sm:$0xff]
        %v316 = vld [vmem:[#allocation8 + $0x68] sm:$0xff]
        %v317 = vld [vmem:[#allocation8 + $0x70] sm:$0xff]
        %v318 = vld [vmem:[#allocation8 + $0x78] sm:$0xff]
        %v319 = vld [vmem:[#allocation8 + $0x80] sm:$0xff]
        %v320 = vld [vmem:[#allocation8 + $0x88] sm:$0xff]
        %v321 = vld [vmem:[#allocation8 + $0x90] sm:$0xff]
        %v322 = vld [vmem:[#allocation8 + $0x98] sm:$0xff]
        %v323 = vld [vmem:[#allocation8 + $0xa0] sm:$0xff]
        %v324 = vld [vmem:[#allocation8 + $0xa8] sm:$0xff]
        %v325 = vld [vmem:[#allocation8 + $0xb0] sm:$0xff]
        %v326 = vld [vmem:[#allocation8 + $0xb8] sm:$0xff]
        %v327 = vld [vmem:[#allocation8 + $0xc0] sm:$0xff]
        %v328 = vld [vmem:[#allocation8 + $0xc8] sm:$0xff]
        %v329 = vld [vmem:[#allocation8 + $0xd0] sm:$0xff]
        %v330 = vld [vmem:[#allocation8 + $0xd8] sm:$0xff]
        %v331 = vld [vmem:[#allocation8 + $0xe0] sm:$0xff]
        %v332 = vld [vmem:[#allocation8 + $0xe8] sm:$0xff]
        %v333 = vld [vmem:[#allocation8 + $0xf0] sm:$0xff]
        %v334 = vld [vmem:[#allocation8 + $0xf8] sm:$0xff]
        %v335 = vld [vmem:[#allocation8 + $0x100] sm:$0xff]
        %v336 = vld [vmem:[#allocation8 + $0x108] sm:$0xff]
        %v337 = vld [vmem:[#allocation8 + $0x110] sm:$0xff]
        %v338 = vld [vmem:[#allocation8 + $0x118] sm:$0xff]
        %v339 = vld [vmem:[#allocation8 + $0x120] sm:$0xff]
        %v340 = vld [vmem:[#allocation8 + $0x128] sm:$0xff]
        %v341 = vld [vmem:[#allocation8 + $0x130] sm:$0xff]
        %v342 = vld [vmem:[#allocation8 + $0x138] sm:$0xff]
        %v343 = vld [vmem:[#allocation8 + $0x140] sm:$0xff]
        %v344 = vld [vmem:[#allocation8 + $0x148] sm:$0xff]
        %v345 = vld [vmem:[#allocation8 + $0x150] sm:$0xff]
        %v346 = vld [vmem:[#allocation8 + $0x158] sm:$0xff]
        %v347 = vld [vmem:[#allocation8 + $0x160] sm:$0xff]
        %v348 = vld [vmem:[#allocation8 + $0x168] sm:$0xff]
        %v349 = vld [vmem:[#allocation8 + $0x170] sm:$0xff]
        %v350 = vld [vmem:[#allocation8 + $0x178] sm:$0xff]
        %v351 = vld [vmem:[#allocation8 + $0x180] sm:$0xff]
        %v352 = vld [vmem:[#allocation8 + $0x188] sm:$0xff]
        %v353 = vld [vmem:[#allocation8 + $0x190] sm:$0xff]
        %v354 = vld [vmem:[#allocation8 + $0x198] sm:$0xff]
        %v355 = vld [vmem:[#allocation8 + $0x1a0] sm:$0xff]
        %v356 = vld [vmem:[#allocation8 + $0x1a8] sm:$0xff]
        %v357 = vld [vmem:[#allocation8 + $0x1b0] sm:$0xff]
        %v358 = vld [vmem:[#allocation8 + $0x1b8] sm:$0xff]
        %v359 = vld [vmem:[#allocation8 + $0x1c0] sm:$0xff]
        %v360 = vld [vmem:[#allocation8 + $0x1c8] sm:$0xff]
        %v361 = vld [vmem:[#allocation8 + $0x1d0] sm:$0xff]
        %v362 = vld [vmem:[#allocation8 + $0x1d8] sm:$0xff]
        %v363 = vld [vmem:[#allocation8 + $0x1e0] sm:$0xff]
        %v364 = vld [vmem:[#allocation8 + $0x1e8] sm:$0xff]
        %v365 = vld [vmem:[#allocation8 + $0x1f0] sm:$0xff]
        %v366 = vld [vmem:[#allocation8 + $0x1f8] sm:$0xff]
        %v367 = vld [vmem:[#allocation8 + $0x200] sm:$0xff]
        %v368 = vld [vmem:[#allocation8 + $0x208] sm:$0xff]
        %v369 = vld [vmem:[#allocation8 + $0x210] sm:$0xff]
        %v370 = vld [vmem:[#allocation8 + $0x218] sm:$0xff]
        %v371 = vld [vmem:[#allocation8 + $0x220] sm:$0xff]
        %v372 = vld [vmem:[#allocation8 + $0x228] sm:$0xff]
        %v373 = vld [vmem:[#allocation8 + $0x230] sm:$0xff]
        %v374 = vld [vmem:[#allocation8 + $0x238] sm:$0xff]
        %v375 = vld [vmem:[#allocation8 + $0x240] sm:$0xff]
        %v376 = vld [vmem:[#allocation8 + $0x248] sm:$0xff]
        %v377 = vld [vmem:[#allocation8 + $0x250] sm:$0xff]
        %v378 = vld [vmem:[#allocation8 + $0x258] sm:$0xff]
        %v379 = vld [vmem:[#allocation8 + $0x260] sm:$0xff]
        %v380 = vld [vmem:[#allocation8 + $0x268] sm:$0xff]
        %v381 = vld [vmem:[#allocation8 + $0x270] sm:$0xff]
        %v382 = vld [vmem:[#allocation8 + $0x278] sm:$0xff]
        %v383 = vld [vmem:[#allocation8 + $0x280] sm:$0xff]
        %v384 = vld [vmem:[#allocation8 + $0x288] sm:$0xff]
        %v385 = vld [vmem:[#allocation8 + $0x290] sm:$0xff]
        %v386 = vld [vmem:[#allocation8 + $0x298] sm:$0xff]
        %v387 = vld [vmem:[#allocation8 + $0x2a0] sm:$0xff]
        %v388 = vld [vmem:[#allocation8 + $0x2a8] sm:$0xff]
        %v389 = vld [vmem:[#allocation8 + $0x2b0] sm:$0xff]
        %v390 = vld [vmem:[#allocation8 + $0x2b8] sm:$0xff]
        %v391 = vld [vmem:[#allocation8 + $0x2c0] sm:$0xff]
        %v392 = vld [vmem:[#allocation8 + $0x2c8] sm:$0xff]
        %v393 = vld [vmem:[#allocation8 + $0x2d0] sm:$0xff]
        %v394 = vld [vmem:[#allocation8 + $0x2d8] sm:$0xff]
        %v395 = vld [vmem:[#allocation8 + $0x2e0] sm:$0xff]
        %v396 = vld [vmem:[#allocation8 + $0x2e8] sm:$0xff]
        %v397 = vld [vmem:[#allocation8 + $0x2f0] sm:$0xff]
        %v398 = vld [vmem:[#allocation8 + $0x2f8] sm:$0xff]
        %v399 = vld [vmem:[#allocation8 + $0x300] sm:$0xff]
        %v400 = vld [vmem:[#allocation8 + $0x308] sm:$0xff]
        %v401 = vld [vmem:[#allocation8 + $0x310] sm:$0xff]
        %v402 = vld [vmem:[#allocation8 + $0x318] sm:$0xff]
        %v403 = vld [vmem:[#allocation8 + $0x320] sm:$0xff]
        %v404 = vld [vmem:[#allocation8 + $0x328] sm:$0xff]
        %v405 = vld [vmem:[#allocation8 + $0x330] sm:$0xff]
        %v406 = vld [vmem:[#allocation8 + $0x338] sm:$0xff]
        %v407 = vld [vmem:[#allocation8 + $0x340] sm:$0xff]
        %v408 = vld [vmem:[#allocation8 + $0x348] sm:$0xff]
        %v409 = vld [vmem:[#allocation8 + $0x350] sm:$0xff]
        %v410 = vld [vmem:[#allocation8 + $0x358] sm:$0xff]
        %v411 = vld [vmem:[#allocation8 + $0x360] sm:$0xff]
        %v412 = vld [vmem:[#allocation8 + $0x368] sm:$0xff]
        %v413 = vld [vmem:[#allocation8 + $0x370] sm:$0xff]
        %v414 = vld [vmem:[#allocation8 + $0x378] sm:$0xff]
        %v415 = vld [vmem:[#allocation8 + $0x380] sm:$0xff]
        %v416 = vld [vmem:[#allocation8 + $0x388] sm:$0xff]
        %v417 = vld [vmem:[#allocation8 + $0x390] sm:$0xff]
        %v418 = vld [vmem:[#allocation8 + $0x398] sm:$0xff]
        %v419 = vld [vmem:[#allocation8 + $0x3a0] sm:$0xff]
        %v420 = vld [vmem:[#allocation8 + $0x3a8] sm:$0xff]
        %v421 = vld [vmem:[#allocation8 + $0x3b0] sm:$0xff]
        %v422 = vld [vmem:[#allocation8 + $0x3b8] sm:$0xff]
        %v423 = vld [vmem:[#allocation8 + $0x3c0] sm:$0xff]
        %v424 = vld [vmem:[#allocation8 + $0x3c8] sm:$0xff]
        %v425 = vld [vmem:[#allocation8 + $0x3d0] sm:$0xff]
        %v426 = vld [vmem:[#allocation8 + $0x3d8] sm:$0xff]
        %v427 = vld [vmem:[#allocation8 + $0x3e0] sm:$0xff]
        %v428 = vld [vmem:[#allocation8 + $0x3e8] sm:$0xff]
        %v429 = vld [vmem:[#allocation8 + $0x3f0] sm:$0xff]
        %v430 = vld [vmem:[#allocation8 + $0x3f8] sm:$0xff]
        %v431 = vld [vmem:[%s254] sm:$0xff]
        %v432 = vld [vmem:[%s254 + $0x8] sm:$0xff]
        %v433 = vld [vmem:[%s254 + $0x10] sm:$0xff]
        %v434 = vld [vmem:[%s254 + $0x18] sm:$0x3]
        %v435 = vld [vmem:[%s254 + $0x20] sm:$0x3]
        %v436 = vld [vmem:[%s254 + $0x28] sm:$0x3]
        %v437 = vlaneseq
        %v438 = vshrl.u32 %v437, 7
        %v439 = vsub.s32 0, %v438
        %v440 = vrot.slane %v297, %v439
        %v441 = vlaneseq
        %v442 = vshrl.u32 %v441, 7
        %v443 = vsub.s32 0, %v442
        %v444 = vrot.slane %v298, %v443
        %v445 = vmul.f32 %v431, %v440
        %v446 = vmul.f32 %v432, %v444
        %v447 = vlaneseq
        %v448 = vshrl.u32 %v447, 7
        %v449 = vsub.s32 1, %v448
        %v450 = vrot.slane %v297, %v449
        %v451 = vlaneseq
        %v452 = vshrl.u32 %v451, 7
        %v453 = vsub.s32 1, %v452
        %v454 = vrot.slane %v298, %v453
        %457 = vrot.lane.b32.xlu0 %v450, 16
        %v458 = vpop.permute.xlu0 %457
        %459 = vrot.lane.b32.xlu0 %v454, 16
        %v460 = vpop.permute.xlu0 %459
        %vm461 = vcmask 130048
        %v462 = vsel %vm461, %v458, %v460
        %v466 = vmul.f32 %v431, %v458
        %v467 = vmul.f32 %v432, %v462
        %v468 = vmul.f32 %v433, %v460
        %472 = vrot.lane.b32.xlu0 %v466, 112
        %v473 = vpop.permute.xlu0 %472
        %474 = vrot.lane.b32.xlu0 %v467, 112
        %v475 = vpop.permute.xlu0 %474
        %476 = vrot.lane.b32.xlu0 %v468, 112
        %v477 = vpop.permute.xlu0 %476
        %vm478 = vcmask 916480
        %v479 = vsel %vm478, %v473, %v475
        %v480 = vsel %vm478, %v475, %v477
        %v483 = vadd.f32 %v445, %v479
        %v484 = vadd.f32 %v446, %v480
        %v485 = vlaneseq
        %v486 = vshrl.u32 %v485, 7
        %v487 = vsub.s32 2, %v486
        %v488 = vrot.slane %v297, %v487
        %v489 = vlaneseq
        %v490 = vshrl.u32 %v489, 7
        %v491 = vsub.s32 2, %v490
        %v492 = vrot.slane %v298, %v491
        %495 = vrot.lane.b32.xlu0 %v488, 32
        %v496 = vpop.permute.xlu0 %495
        %497 = vrot.lane.b32.xlu0 %v492, 32
        %v498 = vpop.permute.xlu0 %497
        %vm499 = vcmask 261120
        %v500 = vsel %vm499, %v496, %v498
        %v504 = vmul.f32 %v431, %v496
        %v505 = vmul.f32 %v432, %v500
        %v506 = vmul.f32 %v433, %v498
        %510 = vrot.lane.b32.xlu0 %v504, 96
        %v511 = vpop.permute.xlu0 %510
        %512 = vrot.lane.b32.xlu0 %v505, 96
        %v513 = vpop.permute.xlu0 %512
        %514 = vrot.lane.b32.xlu0 %v506, 96
        %v515 = vpop.permute.xlu0 %514
        %vm516 = vcmask 785408
        %v517 = vsel %vm516, %v511, %v513
        %v518 = vsel %vm516, %v513, %v515
        %v521 = vadd.f32 %v483, %v517
        %v522 = vadd.f32 %v484, %v518
        %v523 = vlaneseq
        %v524 = vshrl.u32 %v523, 7
        %v525 = vsub.s32 3, %v524
        %v526 = vrot.slane %v297, %v525
        %v527 = vlaneseq
        %v528 = vshrl.u32 %v527, 7
        %v529 = vsub.s32 3, %v528
        %v530 = vrot.slane %v298, %v529
        %v531 = vmul.f32 %v431, %v526
        %v532 = vmul.f32 %v432, %v530
        %v533 = vmul.f32 %v434, %v526
        %v534 = vmul.f32 %v435, %v530
        %vm539 = vcmask 1046528
        %v540 = vrot.slane %v531, 1
        %v541 = vrot.slane %v533, 1
        %v542 = vsel %vm539, %v540, %v541
        %v543 = vrot.slane %v532, 1
        %v544 = vrot.slane %v534, 1
        %v545 = vsel %vm539, %v543, %v544
        %v548 = vadd.f32 %v521, %v542
        %v549 = vadd.f32 %v522, %v545
        %v550 = vlaneseq
        %v551 = vshrl.u32 %v550, 7
        %v552 = vsub.s32 4, %v551
        %v553 = vrot.slane %v297, %v552
        %v554 = vlaneseq
        %v555 = vshrl.u32 %v554, 7
        %v556 = vsub.s32 4, %v555
        %v557 = vrot.slane %v298, %v556
        %560 = vrot.lane.b32.xlu0 %v553, 16
        %v561 = vpop.permute.xlu0 %560
        %562 = vrot.lane.b32.xlu0 %v557, 16
        %v563 = vpop.permute.xlu0 %562
        %v564 = vsel %vm461, %v561, %v563
        %v568 = vmul.f32 %v431, %v561
        %v569 = vmul.f32 %v432, %v564
        %v570 = vmul.f32 %v433, %v563
        %v571 = vmul.f32 %v434, %v561
        %v572 = vmul.f32 %v435, %v564
        %v573 = vmul.f32 %v436, %v563
        %v580 = vrot.slane %v568, 1
        %v581 = vrot.slane %v571, 1
        %v582 = vsel %vm539, %v580, %v581
        %v583 = vrot.slane %v569, 1
        %v584 = vrot.slane %v572, 1
        %v585 = vsel %vm539, %v583, %v584
        %v586 = vrot.slane %v570, 1
        %v587 = vrot.slane %v573, 1
        %v588 = vsel %vm539, %v586, %v587
        %589 = vrot.lane.b32.xlu0 %v582, 112
        %v590 = vpop.permute.xlu0 %589
        %591 = vrot.lane.b32.xlu0 %v585, 112
        %v592 = vpop.permute.xlu0 %591
        %593 = vrot.lane.b32.xlu0 %v588, 112
        %v594 = vpop.permute.xlu0 %593
        %v595 = vsel %vm478, %v590, %v592
        %v596 = vsel %vm478, %v592, %v594
        %v599 = vadd.f32 %v548, %v595
        %v600 = vadd.f32 %v549, %v596
        %v601 = vlaneseq
        %v602 = vshrl.u32 %v601, 7
        %v603 = vsub.s32 5, %v602
        %v604 = vrot.slane %v297, %v603
        %v605 = vlaneseq
        %v606 = vshrl.u32 %v605, 7
        %v607 = vsub.s32 5, %v606
        %v608 = vrot.slane %v298, %v607
        %611 = vrot.lane.b32.xlu0 %v604, 32
        %v612 = vpop.permute.xlu0 %611
        %613 = vrot.lane.b32.xlu0 %v608, 32
        %v614 = vpop.permute.xlu0 %613
        %v615 = vsel %vm499, %v612, %v614
        %v619 = vmul.f32 %v431, %v612
        %v620 = vmul.f32 %v432, %v615
        %v621 = vmul.f32 %v433, %v614
        %v622 = vmul.f32 %v434, %v612
        %v623 = vmul.f32 %v435, %v615
        %v624 = vmul.f32 %v436, %v614
        %v631 = vrot.slane %v619, 1
        %v632 = vrot.slane %v622, 1
        %v633 = vsel %vm539, %v631, %v632
        %v634 = vrot.slane %v620, 1
        %v635 = vrot.slane %v623, 1
        %v636 = vsel %vm539, %v634, %v635
        %v637 = vrot.slane %v621, 1
        %v638 = vrot.slane %v624, 1
        %v639 = vsel %vm539, %v637, %v638
        %640 = vrot.lane.b32.xlu0 %v633, 96
        %v641 = vpop.permute.xlu0 %640
        %642 = vrot.lane.b32.xlu0 %v636, 96
        %v643 = vpop.permute.xlu0 %642
        %644 = vrot.lane.b32.xlu0 %v639, 96
        %v645 = vpop.permute.xlu0 %644
        %v646 = vsel %vm516, %v641, %v643
        %v647 = vsel %vm516, %v643, %v645
        %v650 = vadd.f32 %v599, %v646
        %v651 = vadd.f32 %v600, %v647
        %v652 = vlaneseq
        %v653 = vshrl.u32 %v652, 7
        %v654 = vsub.s32 6, %v653
        %v655 = vrot.slane %v297, %v654
        %v656 = vlaneseq
        %v657 = vshrl.u32 %v656, 7
        %v658 = vsub.s32 6, %v657
        %v659 = vrot.slane %v298, %v658
        %v660 = vmul.f32 %v431, %v655
        %v661 = vmul.f32 %v432, %v659
        %v662 = vmul.f32 %v434, %v655
        %v663 = vmul.f32 %v435, %v659
        %vm668 = vcmask 1045504
        %v669 = vrot.slane %v660, 2
        %v670 = vrot.slane %v662, 2
        %v671 = vsel %vm668, %v669, %v670
        %v672 = vrot.slane %v661, 2
        %v673 = vrot.slane %v663, 2
        %v674 = vsel %vm668, %v672, %v673
        %v677 = vadd.f32 %v650, %v671
        %v678 = vadd.f32 %v651, %v674
        %v679 = vlaneseq
        %v680 = vshrl.u32 %v679, 7
        %v681 = vsub.s32 7, %v680
        %v682 = vrot.slane %v297, %v681
        %v683 = vlaneseq
        %v684 = vshrl.u32 %v683, 7
        %v685 = vsub.s32 7, %v684
        %v686 = vrot.slane %v298, %v685
        %689 = vrot.lane.b32.xlu0 %v682, 16
        %v690 = vpop.permute.xlu0 %689
        %691 = vrot.lane.b32.xlu0 %v686, 16
        %v692 = vpop.permute.xlu0 %691
        %v693 = vsel %vm461, %v690, %v692
        %v697 = vmul.f32 %v431, %v690
        %v698 = vmul.f32 %v432, %v693
        %v699 = vmul.f32 %v433, %v692
        %v700 = vmul.f32 %v434, %v690
        %v701 = vmul.f32 %v435, %v693
        %v702 = vmul.f32 %v436, %v692
        %v709 = vrot.slane %v697, 2
        %v710 = vrot.slane %v700, 2
        %v711 = vsel %vm668, %v709, %v710
        %v712 = vrot.slane %v698, 2
        %v713 = vrot.slane %v701, 2
        %v714 = vsel %vm668, %v712, %v713
        %v715 = vrot.slane %v699, 2
        %v716 = vrot.slane %v702, 2
        %v717 = vsel %vm668, %v715, %v716
        %718 = vrot.lane.b32.xlu0 %v711, 112
        %v719 = vpop.permute.xlu0 %718
        %720 = vrot.lane.b32.xlu0 %v714, 112
        %v721 = vpop.permute.xlu0 %720
        %722 = vrot.lane.b32.xlu0 %v717, 112
        %v723 = vpop.permute.xlu0 %722
        %v724 = vsel %vm478, %v719, %v721
        %v725 = vsel %vm478, %v721, %v723
        %v728 = vadd.f32 %v677, %v724
        %v729 = vadd.f32 %v678, %v725
        %v730 = vlaneseq
        %v731 = vshrl.u32 %v730, 7
        %v732 = vsub.s32 0, %v731
        %v733 = vrot.slane %v299, %v732
        %v734 = vlaneseq
        %v735 = vshrl.u32 %v734, 7
        %v736 = vsub.s32 0, %v735
        %v737 = vrot.slane %v300, %v736
        %740 = vrot.lane.b32.xlu0 %v733, 32
        %v741 = vpop.permute.xlu0 %740
        %742 = vrot.lane.b32.xlu0 %v737, 32
        %v743 = vpop.permute.xlu0 %742
        %v744 = vsel %vm499, %v741, %v743
        %v748 = vmul.f32 %v431, %v741
        %v749 = vmul.f32 %v432, %v744
        %v750 = vmul.f32 %v433, %v743
        %v751 = vmul.f32 %v434, %v741
        %v752 = vmul.f32 %v435, %v744
        %v753 = vmul.f32 %v436, %v743
        %v760 = vrot.slane %v748, 2
        %v761 = vrot.slane %v751, 2
        %v762 = vsel %vm668, %v760, %v761
        %v763 = vrot.slane %v749, 2
        %v764 = vrot.slane %v752, 2
        %v765 = vsel %vm668, %v763, %v764
        %v766 = vrot.slane %v750, 2
        %v767 = vrot.slane %v753, 2
        %v768 = vsel %vm668, %v766, %v767
        %769 = vrot.lane.b32.xlu0 %v762, 96
        %v770 = vpop.permute.xlu0 %769
        %771 = vrot.lane.b32.xlu0 %v765, 96
        %v772 = vpop.permute.xlu0 %771
        %773 = vrot.lane.b32.xlu0 %v768, 96
        %v774 = vpop.permute.xlu0 %773
        %v775 = vsel %vm516, %v770, %v772
        %v776 = vsel %vm516, %v772, %v774
        %v779 = vadd.f32 %v728, %v775
        %v780 = vadd.f32 %v729, %v776
        %v782 = vlaneseq
        %v783 = vshrl.u32 %v782, 7
        %v784 = vsub.s32 0, %v783
        %v785 = vrot.slane %v301, %v784
        %v786 = vlaneseq
        %v787 = vshrl.u32 %v786, 7
        %v788 = vsub.s32 1, %v787
        %v789 = vrot.slane %v301, %v788
        %v792 = vadd.f32 %v779, %v785
        %v793 = vadd.f32 %v780, %v789
        %v794 = vmax.f32 %v792, 0.0
        %v795 = vmax.f32 %v793, 0.0
        %v797 = vlaneseq
        %v798 = vshrl.u32 %v797, 7
        %v799 = vsub.s32 0, %v798
        %v800 = vrot.slane %v302, %v799
        %v801 = vlaneseq
        %v802 = vshrl.u32 %v801, 7
        %v803 = vsub.s32 1, %v802
        %v804 = vrot.slane %v302, %v803
        %v805 = vlaneseq
        %v806 = vshrl.u32 %v805, 7
        %v807 = vsub.s32 2, %v806
        %v808 = vrot.slane %v302, %v807
        %v809 = vlaneseq
        %v810 = vshrl.u32 %v809, 7
        %v811 = vsub.s32 3, %v810
        %v812 = vrot.slane %v302, %v811
        %817 = vmatprep.subr.mxu0 %v304
        %818 = vmatpush1.msra.mxu0 %v303
        %819 = vmatprep.subr.mxu0 %v308
        %820 = vmatpush1.msra.mxu0 %v307
        %821 = vmatprep.subr.mxu0 %v312
        %822 = vmatpush1.msra.mxu0 %v311
        %823 = vmatprep.subr.mxu0 %v316
        %824 = vmatpush1.msra.mxu0 %v315
        %825 = vmatprep.subr.mxu0 %v320
        %826 = vmatpush1.msra.mxu0 %v319
        %827 = vmatprep.subr.mxu0 %v324
        %828 = vmatpush1.msra.mxu0 %v323
        %829 = vmatprep.subr.mxu0 %v328
        %830 = vmatpush1.msra.mxu0 %v327
        %831 = vmatprep.subr.mxu0 %v332
        %832 = vmatpush1.msra.mxu0 %v331
        %833 = vmatprep.subr.mxu0 %v336
        %834 = vmatpush1.msra.mxu0 %v335
        %835 = vmatprep.subr.mxu0 %v340
        %836 = vmatpush1.msra.mxu0 %v339
        %837 = vmatprep.subr.mxu0 %v344
        %838 = vmatpush1.msra.mxu0 %v343
        %839 = vmatprep.subr.mxu0 %v348
        %840 = vmatpush1.msra.mxu0 %v347
        %841 = vmatprep.subr.mxu0 %v352
        %842 = vmatpush1.msra.mxu0 %v351
        %843 = vmatprep.subr.mxu0 %v356
        %844 = vmatpush1.msra.mxu0 %v355
        %845 = vmatprep.subr.mxu0 %v360
        %846 = vmatpush1.msra.mxu0 %v359
        %847 = vmatprep.subr.mxu0 %v364
        %848 = vmatpush1.msra.mxu0 %v363
        %849 = vmatprep.subr.mxu0 %v368
        %850 = vmatpush1.msra.mxu0 %v367
        %851 = vmatprep.subr.mxu0 %v372
        %852 = vmatpush1.msra.mxu0 %v371
        %853 = vmatprep.subr.mxu0 %v376
        %854 = vmatpush1.msra.mxu0 %v375
        %855 = vmatprep.subr.mxu0 %v380
        %856 = vmatpush1.msra.mxu0 %v379
        %857 = vmatprep.subr.mxu0 %v384
        %858 = vmatpush1.msra.mxu0 %v383
        %859 = vmatprep.subr.mxu0 %v388
        %860 = vmatpush1.msra.mxu0 %v387
        %861 = vmatprep.subr.mxu0 %v392
        %862 = vmatpush1.msra.mxu0 %v391
        %863 = vmatprep.subr.mxu0 %v396
        %864 = vmatpush1.msra.mxu0 %v395
        %865 = vmatprep.subr.mxu0 %v400
        %866 = vmatpush1.msra.mxu0 %v399
        %867 = vmatprep.subr.mxu0 %v404
        %868 = vmatpush1.msra.mxu0 %v403
        %869 = vmatprep.subr.mxu0 %v408
        %870 = vmatpush1.msra.mxu0 %v407
        %871 = vmatprep.subr.mxu0 %v412
        %872 = vmatpush1.msra.mxu0 %v411
        %873 = vmatprep.subr.mxu0 %v416
        %874 = vmatpush1.msra.mxu0 %v415
        %875 = vmatprep.subr.mxu0 %v420
        %876 = vmatpush1.msra.mxu0 %v419
        %877 = vmatprep.subr.mxu0 %v424
        %878 = vmatpush1.msra.mxu0 %v423
        %879 = vmatprep.subr.mxu0 %v428
        %880 = vmatpush1.msra.mxu0 %v427
        %881 = vmatprep.mubr.f32.mxu0 %v795
        %882 = vmatmul.mubr.f32.gmra.mrb[0].mxu0 %v794
        %v883 = vpop.f32.mrb[0].mxu0
        %v884 = vadd.f32 %v800, %v883
        %v885 = vpop.f32.mrb[0].mxu0
        %v886 = vadd.f32 %v804, %v885
        %887 = vdwg.mxu0
        %888 = vmatprep.subr.mxu0 %v306
        %889 = vmatpush1.msra.mxu0 %v305
        %890 = vmatprep.subr.mxu0 %v310
        %891 = vmatpush1.msra.mxu0 %v309
        %892 = vmatprep.subr.mxu0 %v314
        %893 = vmatpush1.msra.mxu0 %v313
        %894 = vmatprep.subr.mxu0 %v318
        %895 = vmatpush1.msra.mxu0 %v317
        %896 = vmatprep.subr.mxu0 %v322
        %897 = vmatpush1.msra.mxu0 %v321
        %898 = vmatprep.subr.mxu0 %v326
        %899 = vmatpush1.msra.mxu0 %v325
        %900 = vmatprep.subr.mxu0 %v330
        %901 = vmatpush1.msra.mxu0 %v329
        %902 = vmatprep.subr.mxu0 %v334
        %903 = vmatpush1.msra.mxu0 %v333
        %904 = vmatprep.subr.mxu0 %v338
        %905 = vmatpush1.msra.mxu0 %v337
        %906 = vmatprep.subr.mxu0 %v342
        %907 = vmatpush1.msra.mxu0 %v341
        %908 = vmatprep.subr.mxu0 %v346
        %909 = vmatpush1.msra.mxu0 %v345
        %910 = vmatprep.subr.mxu0 %v350
        %911 = vmatpush1.msra.mxu0 %v349
        %912 = vmatprep.subr.mxu0 %v354
        %913 = vmatpush1.msra.mxu0 %v353
        %914 = vmatprep.subr.mxu0 %v358
        %915 = vmatpush1.msra.mxu0 %v357
        %916 = vmatprep.subr.mxu0 %v362
        %917 = vmatpush1.msra.mxu0 %v361
        %918 = vmatprep.subr.mxu0 %v366
        %919 = vmatpush1.msra.mxu0 %v365
        %920 = vmatprep.subr.mxu0 %v370
        %921 = vmatpush1.msra.mxu0 %v369
        %922 = vmatprep.subr.mxu0 %v374
        %923 = vmatpush1.msra.mxu0 %v373
        %924 = vmatprep.subr.mxu0 %v378
        %925 = vmatpush1.msra.mxu0 %v377
        %926 = vmatprep.subr.mxu0 %v382
        %927 = vmatpush1.msra.mxu0 %v381
        %928 = vmatprep.subr.mxu0 %v386
        %929 = vmatpush1.msra.mxu0 %v385
        %930 = vmatprep.subr.mxu0 %v390
        %931 = vmatpush1.msra.mxu0 %v389
        %932 = vmatprep.subr.mxu0 %v394
        %933 = vmatpush1.msra.mxu0 %v393
        %934 = vmatprep.subr.mxu0 %v398
        %935 = vmatpush1.msra.mxu0 %v397
        %936 = vmatprep.subr.mxu0 %v402
        %937 = vmatpush1.msra.mxu0 %v401
        %938 = vmatprep.subr.mxu0 %v406
        %939 = vmatpush1.msra.mxu0 %v405
        %940 = vmatprep.subr.mxu0 %v410
        %941 = vmatpush1.msra.mxu0 %v409
        %942 = vmatprep.subr.mxu0 %v414
        %943 = vmatpush1.msra.mxu0 %v413
        %944 = vmatprep.subr.mxu0 %v418
        %945 = vmatpush1.msra.mxu0 %v417
        %946 = vmatprep.subr.mxu0 %v422
        %947 = vmatpush1.msra.mxu0 %v421
        %948 = vmatprep.subr.mxu0 %v426
        %949 = vmatpush1.msra.mxu0 %v425
        %950 = vmatprep.subr.mxu0 %v430
        %951 = vmatpush1.msra.mxu0 %v429
        %952 = vmatprep.mubr.f32.mxu0 %v795
        %953 = vmatmul.mubr.f32.gmra.mrb[0].mxu0 %v794
        %v954 = vpop.f32.mrb[0].mxu0
        %v955 = vadd.f32 %v808, %v954
        %v956 = vpop.f32.mrb[0].mxu0
        %v957 = vadd.f32 %v812, %v956
        %958 = vdwg.mxu0
        %v959 = vmax.f32 %v884, 0.0
        %v960 = vmax.f32 %v886, 0.0
        %v961 = vmax.f32 %v955, 0.0
        %v962 = vmax.f32 %v957, 0.0
        %963 = vst [vmem:[%s296] sm:$0xff] %v959
        %964 = vst [vmem:[%s296 + $0x8] sm:$0xff] %v960
        %965 = vst [vmem:[%s296 + $0x10] sm:$0xff] %v961
        %966 = vst [vmem:[%s296 + $0x18] sm:$0xff] %v962
        %v967 = vld [vmem:[%s254 + $0x18] sm:$0xff]
        %v968 = vld [vmem:[%s254 + $0x20] sm:$0xff]
        %v969 = vld [vmem:[%s254 + $0x28] sm:$0xff]
        %v970 = vld [vmem:[%s254 + $0x30] sm:$0x3]
        %v971 = vld [vmem:[%s254 + $0x38] sm:$0x3]
        %v972 = vld [vmem:[%s254 + $0x40] sm:$0x3]
        %v973 = vmul.f32 %v967, %v440
        %v974 = vmul.f32 %v968, %v444
        %v975 = vmul.f32 %v967, %v458
        %v976 = vmul.f32 %v968, %v462
        %v977 = vmul.f32 %v969, %v460
        %981 = vrot.lane.b32.xlu0 %v975, 112
        %v982 = vpop.permute.xlu0 %981
        %983 = vrot.lane.b32.xlu0 %v976, 112
        %v984 = vpop.permute.xlu0 %983
        %985 = vrot.lane.b32.xlu0 %v977, 112
        %v986 = vpop.permute.xlu0 %985
        %v987 = vsel %vm478, %v982, %v984
        %v988 = vsel %vm478, %v984, %v986
        %v991 = vadd.f32 %v973, %v987
        %v992 = vadd.f32 %v974, %v988
        %v993 = vmul.f32 %v967, %v496
        %v994 = vmul.f32 %v968, %v500
        %v995 = vmul.f32 %v969, %v498
        %999 = vrot.lane.b32.xlu0 %v993, 96
        %v1000 = vpop.permute.xlu0 %999
        %1001 = vrot.lane.b32.xlu0 %v994, 96
        %v1002 = vpop.permute.xlu0 %1001
        %1003 = vrot.lane.b32.xlu0 %v995, 96
        %v1004 = vpop.permute.xlu0 %1003
        %v1005 = vsel %vm516, %v1000, %v1002
        %v1006 = vsel %vm516, %v1002, %v1004
        %v1009 = vadd.f32 %v991, %v1005
        %v1010 = vadd.f32 %v992, %v1006
        %v1011 = vmul.f32 %v967, %v526
        %v1012 = vmul.f32 %v968, %v530
        %v1013 = vmul.f32 %v970, %v526
        %v1014 = vmul.f32 %v971, %v530
        %v1019 = vrot.slane %v1011, 1
        %v1020 = vrot.slane %v1013, 1
        %v1021 = vsel %vm539, %v1019, %v1020
        %v1022 = vrot.slane %v1012, 1
        %v1023 = vrot.slane %v1014, 1
        %v1024 = vsel %vm539, %v1022, %v1023
        %v1027 = vadd.f32 %v1009, %v1021
        %v1028 = vadd.f32 %v1010, %v1024
        %v1029 = vmul.f32 %v967, %v561
        %v1030 = vmul.f32 %v968, %v564
        %v1031 = vmul.f32 %v969, %v563
        %v1032 = vmul.f32 %v970, %v561
        %v1033 = vmul.f32 %v971, %v564
        %v1034 = vmul.f32 %v972, %v563
        %v1041 = vrot.slane %v1029, 1
        %v1042 = vrot.slane %v1032, 1
        %v1043 = vsel %vm539, %v1041, %v1042
        %v1044 = vrot.slane %v1030, 1
        %v1045 = vrot.slane %v1033, 1
        %v1046 = vsel %vm539, %v1044, %v1045
        %v1047 = vrot.slane %v1031, 1
        %v1048 = vrot.slane %v1034, 1
        %v1049 = vsel %vm539, %v1047, %v1048
        %1050 = vrot.lane.b32.xlu0 %v1043, 112
        %v1051 = vpop.permute.xlu0 %1050
        %1052 = vrot.lane.b32.xlu0 %v1046, 112
        %v1053 = vpop.permute.xlu0 %1052
        %1054 = vrot.lane.b32.xlu0 %v1049, 112
        %v1055 = vpop.permute.xlu0 %1054
        %v1056 = vsel %vm478, %v1051, %v1053
        %v1057 = vsel %vm478, %v1053, %v1055
        %v1060 = vadd.f32 %v1027, %v1056
        %v1061 = vadd.f32 %v1028, %v1057
        %v1062 = vmul.f32 %v967, %v612
        %v1063 = vmul.f32 %v968, %v615
        %v1064 = vmul.f32 %v969, %v614
        %v1065 = vmul.f32 %v970, %v612
        %v1066 = vmul.f32 %v971, %v615
        %v1067 = vmul.f32 %v972, %v614
        %v1074 = vrot.slane %v1062, 1
        %v1075 = vrot.slane %v1065, 1
        %v1076 = vsel %vm539, %v1074, %v1075
        %v1077 = vrot.slane %v1063, 1
        %v1078 = vrot.slane %v1066, 1
        %v1079 = vsel %vm539, %v1077, %v1078
        %v1080 = vrot.slane %v1064, 1
        %v1081 = vrot.slane %v1067, 1
        %v1082 = vsel %vm539, %v1080, %v1081
        %1083 = vrot.lane.b32.xlu0 %v1076, 96
        %v1084 = vpop.permute.xlu0 %1083
        %1085 = vrot.lane.b32.xlu0 %v1079, 96
        %v1086 = vpop.permute.xlu0 %1085
        %1087 = vrot.lane.b32.xlu0 %v1082, 96
        %v1088 = vpop.permute.xlu0 %1087
        %v1089 = vsel %vm516, %v1084, %v1086
        %v1090 = vsel %vm516, %v1086, %v1088
        %v1093 = vadd.f32 %v1060, %v1089
        %v1094 = vadd.f32 %v1061, %v1090
        %v1095 = vmul.f32 %v967, %v655
        %v1096 = vmul.f32 %v968, %v659
        %v1097 = vmul.f32 %v970, %v655
        %v1098 = vmul.f32 %v971, %v659
        %v1103 = vrot.slane %v1095, 2
        %v1104 = vrot.slane %v1097, 2
        %v1105 = vsel %vm668, %v1103, %v1104
        %v1106 = vrot.slane %v1096, 2
        %v1107 = vrot.slane %v1098, 2
        %v1108 = vsel %vm668, %v1106, %v1107
        %v1111 = vadd.f32 %v1093, %v1105
        %v1112 = vadd.f32 %v1094, %v1108
        %v1113 = vmul.f32 %v967, %v690
        %v1114 = vmul.f32 %v968, %v693
        %v1115 = vmul.f32 %v969, %v692
        %v1116 = vmul.f32 %v970, %v690
        %v1117 = vmul.f32 %v971, %v693
        %v1118 = vmul.f32 %v972, %v692
        %v1125 = vrot.slane %v1113, 2
        %v1126 = vrot.slane %v1116, 2
        %v1127 = vsel %vm668, %v1125, %v1126
        %v1128 = vrot.slane %v1114, 2
        %v1129 = vrot.slane %v1117, 2
        %v1130 = vsel %vm668, %v1128, %v1129
        %v1131 = vrot.slane %v1115, 2
        %v1132 = vrot.slane %v1118, 2
        %v1133 = vsel %vm668, %v1131, %v1132
        %1134 = vrot.lane.b32.xlu0 %v1127, 112
        %v1135 = vpop.permute.xlu0 %1134
        %1136 = vrot.lane.b32.xlu0 %v1130, 112
        %v1137 = vpop.permute.xlu0 %1136
        %1138 = vrot.lane.b32.xlu0 %v1133, 112
        %v1139 = vpop.permute.xlu0 %1138
        %v1140 = vsel %vm478, %v1135, %v1137
        %v1141 = vsel %vm478, %v1137, %v1139
        %v1144 = vadd.f32 %v1111, %v1140
        %v1145 = vadd.f32 %v1112, %v1141
        %v1146 = vmul.f32 %v967, %v741
        %v1147 = vmul.f32 %v968, %v744
        %v1148 = vmul.f32 %v969, %v743
        %v1149 = vmul.f32 %v970, %v741
        %v1150 = vmul.f32 %v971, %v744
        %v1151 = vmul.f32 %v972, %v743
        %v1158 = vrot.slane %v1146, 2
        %v1159 = vrot.slane %v1149, 2
        %v1160 = vsel %vm668, %v1158, %v1159
        %v1161 = vrot.slane %v1147, 2
        %v1162 = vrot.slane %v1150, 2
        %v1163 = vsel %vm668, %v1161, %v1162
        %v1164 = vrot.slane %v1148, 2
        %v1165 = vrot.slane %v1151, 2
        %v1166 = vsel %vm668, %v1164, %v1165
        %1167 = vrot.lane.b32.xlu0 %v1160, 96
        %v1168 = vpop.permute.xlu0 %1167
        %1169 = vrot.lane.b32.xlu0 %v1163, 96
        %v1170 = vpop.permute.xlu0 %1169
        %1171 = vrot.lane.b32.xlu0 %v1166, 96
        %v1172 = vpop.permute.xlu0 %1171
        %v1173 = vsel %vm516, %v1168, %v1170
        %v1174 = vsel %vm516, %v1170, %v1172
        %v1177 = vadd.f32 %v1144, %v1173
        %v1178 = vadd.f32 %v1145, %v1174
        %v1179 = vadd.f32 %v1177, %v785
        %v1180 = vadd.f32 %v1178, %v789
        %v1181 = vmax.f32 %v1179, 0.0
        %v1182 = vmax.f32 %v1180, 0.0
        %1183 = vmatprep.subr.mxu0 %v304
        %1184 = vmatpush1.msra.mxu0 %v303
        %1185 = vmatprep.subr.mxu0 %v308
        %1186 = vmatpush1.msra.mxu0 %v307
        %1187 = vmatprep.subr.mxu0 %v312
        %1188 = vmatpush1.msra.mxu0 %v311
        %1189 = vmatprep.subr.mxu0 %v316
        %1190 = vmatpush1.msra.mxu0 %v315
        %1191 = vmatprep.subr.mxu0 %v320
        %1192 = vmatpush1.msra.mxu0 %v319
        %1193 = vmatprep.subr.mxu0 %v324
        %1194 = vmatpush1.msra.mxu0 %v323
        %1195 = vmatprep.subr.mxu0 %v328
        %1196 = vmatpush1.msra.mxu0 %v327
        %1197 = vmatprep.subr.mxu0 %v332
        %1198 = vmatpush1.msra.mxu0 %v331
        %1199 = vmatprep.subr.mxu0 %v336
        %1200 = vmatpush1.msra.mxu0 %v335
        %1201 = vmatprep.subr.mxu0 %v340
        %1202 = vmatpush1.msra.mxu0 %v339
        %1203 = vmatprep.subr.mxu0 %v344
        %1204 = vmatpush1.msra.mxu0 %v343
        %1205 = vmatprep.subr.mxu0 %v348
        %1206 = vmatpush1.msra.mxu0 %v347
        %1207 = vmatprep.subr.mxu0 %v352
        %1208 = vmatpush1.msra.mxu0 %v351
        %1209 = vmatprep.subr.mxu0 %v356
        %1210 = vmatpush1.msra.mxu0 %v355
        %1211 = vmatprep.subr.mxu0 %v360
        %1212 = vmatpush1.msra.mxu0 %v359
        %1213 = vmatprep.subr.mxu0 %v364
        %1214 = vmatpush1.msra.mxu0 %v363
        %1215 = vmatprep.subr.mxu0 %v368
        %1216 = vmatpush1.msra.mxu0 %v367
        %1217 = vmatprep.subr.mxu0 %v372
        %1218 = vmatpush1.msra.mxu0 %v371
        %1219 = vmatprep.subr.mxu0 %v376
        %1220 = vmatpush1.msra.mxu0 %v375
        %1221 = vmatprep.subr.mxu0 %v380
        %1222 = vmatpush1.msra.mxu0 %v379
        %1223 = vmatprep.subr.mxu0 %v384
        %1224 = vmatpush1.msra.mxu0 %v383
        %1225 = vmatprep.subr.mxu0 %v388
        %1226 = vmatpush1.msra.mxu0 %v387
        %1227 = vmatprep.subr.mxu0 %v392
        %1228 = vmatpush1.msra.mxu0 %v391
        %1229 = vmatprep.subr.mxu0 %v396
        %1230 = vmatpush1.msra.mxu0 %v395
        %1231 = vmatprep.subr.mxu0 %v400
        %1232 = vmatpush1.msra.mxu0 %v399
        %1233 = vmatprep.subr.mxu0 %v404
        %1234 = vmatpush1.msra.mxu0 %v403
        %1235 = vmatprep.subr.mxu0 %v408
        %1236 = vmatpush1.msra.mxu0 %v407
        %1237 = vmatprep.subr.mxu0 %v412
        %1238 = vmatpush1.msra.mxu0 %v411
        %1239 = vmatprep.subr.mxu0 %v416
        %1240 = vmatpush1.msra.mxu0 %v415
        %1241 = vmatprep.subr.mxu0 %v420
        %1242 = vmatpush1.msra.mxu0 %v419
        %1243 = vmatprep.subr.mxu0 %v424
        %1244 = vmatpush1.msra.mxu0 %v423
        %1245 = vmatprep.subr.mxu0 %v428
        %1246 = vmatpush1.msra.mxu0 %v427
        %1247 = vmatprep.mubr.f32.mxu0 %v1182
        %1248 = vmatmul.mubr.f32.gmra.mrb[0].mxu0 %v1181
        %v1249 = vpop.f32.mrb[0].mxu0
        %v1250 = vadd.f32 %v800, %v1249
        %v1251 = vpop.f32.mrb[0].mxu0
        %v1252 = vadd.f32 %v804, %v1251
        %1253 = vdwg.mxu0
        %1254 = vmatprep.subr.mxu0 %v306
        %1255 = vmatpush1.msra.mxu0 %v305
        %1256 = vmatprep.subr.mxu0 %v310
        %1257 = vmatpush1.msra.mxu0 %v309
        %1258 = vmatprep.subr.mxu0 %v314
        %1259 = vmatpush1.msra.mxu0 %v313
        %1260 = vmatprep.subr.mxu0 %v318
        %1261 = vmatpush1.msra.mxu0 %v317
        %1262 = vmatprep.subr.mxu0 %v322
        %1263 = vmatpush1.msra.mxu0 %v321
        %1264 = vmatprep.subr.mxu0 %v326
        %1265 = vmatpush1.msra.mxu0 %v325
        %1266 = vmatprep.subr.mxu0 %v330
        %1267 = vmatpush1.msra.mxu0 %v329
        %1268 = vmatprep.subr.mxu0 %v334
        %1269 = vmatpush1.msra.mxu0 %v333
        %1270 = vmatprep.subr.mxu0 %v338
        %1271 = vmatpush1.msra.mxu0 %v337
        %1272 = vmatprep.subr.mxu0 %v342
        %1273 = vmatpush1.msra.mxu0 %v341
        %1274 = vmatprep.subr.mxu0 %v346
        %1275 = vmatpush1.msra.mxu0 %v345
        %1276 = vmatprep.subr.mxu0 %v350
        %1277 = vmatpush1.msra.mxu0 %v349
        %1278 = vmatprep.subr.mxu0 %v354
        %1279 = vmatpush1.msra.mxu0 %v353
        %1280 = vmatprep.subr.mxu0 %v358
        %1281 = vmatpush1.msra.mxu0 %v357
        %1282 = vmatprep.subr.mxu0 %v362
        %1283 = vmatpush1.msra.mxu0 %v361
        %1284 = vmatprep.subr.mxu0 %v366
        %1285 = vmatpush1.msra.mxu0 %v365
        %1286 = vmatprep.subr.mxu0 %v370
        %1287 = vmatpush1.msra.mxu0 %v369
        %1288 = vmatprep.subr.mxu0 %v374
        %1289 = vmatpush1.msra.mxu0 %v373
        %1290 = vmatprep.subr.mxu0 %v378
        %1291 = vmatpush1.msra.mxu0 %v377
        %1292 = vmatprep.subr.mxu0 %v382
        %1293 = vmatpush1.msra.mxu0 %v381
        %1294 = vmatprep.subr.mxu0 %v386
        %1295 = vmatpush1.msra.mxu0 %v385
        %1296 = vmatprep.subr.mxu0 %v390
        %1297 = vmatpush1.msra.mxu0 %v389
        %1298 = vmatprep.subr.mxu0 %v394
        %1299 = vmatpush1.msra.mxu0 %v393
        %1300 = vmatprep.subr.mxu0 %v398
        %1301 = vmatpush1.msra.mxu0 %v397
        %1302 = vmatprep.subr.mxu0 %v402
        %1303 = vmatpush1.msra.mxu0 %v401
        %1304 = vmatprep.subr.mxu0 %v406
        %1305 = vmatpush1.msra.mxu0 %v405
        %1306 = vmatprep.subr.mxu0 %v410
        %1307 = vmatpush1.msra.mxu0 %v409
        %1308 = vmatprep.subr.mxu0 %v414
        %1309 = vmatpush1.msra.mxu0 %v413
        %1310 = vmatprep.subr.mxu0 %v418
        %1311 = vmatpush1.msra.mxu0 %v417
        %1312 = vmatprep.subr.mxu0 %v422
        %1313 = vmatpush1.msra.mxu0 %v421
        %1314 = vmatprep.subr.mxu0 %v426
        %1315 = vmatpush1.msra.mxu0 %v425
        %1316 = vmatprep.subr.mxu0 %v430
        %1317 = vmatpush1.msra.mxu0 %v429
        %1318 = vmatprep.mubr.f32.mxu0 %v1182
        %1319 = vmatmul.mubr.f32.gmra.mrb[0].mxu0 %v1181
        %v1320 = vpop.f32.mrb[0].mxu0
        %v1321 = vadd.f32 %v808, %v1320
        %v1322 = vpop.f32.mrb[0].mxu0
        %v1323 = vadd.f32 %v812, %v1322
        %1324 = vdwg.mxu0
        %v1325 = vmax.f32 %v1250, 0.0
        %v1326 = vmax.f32 %v1252, 0.0
        %v1327 = vmax.f32 %v1321, 0.0
        %v1328 = vmax.f32 %v1323, 0.0
        %1329 = vst [vmem:[%s296 + $0x20] sm:$0xff] %v1325
        %1330 = vst [vmem:[%s296 + $0x28] sm:$0xff] %v1326
        %1331 = vst [vmem:[%s296 + $0x30] sm:$0xff] %v1327
        %1332 = vst [vmem:[%s296 + $0x38] sm:$0xff] %v1328
        %s1333 = sand.u32 %s142, 1
        %s1334 = scalar_lea.sflag [#allocation4], %s1333
        %s1335 = sand.u32 %s142, 1
        %s1336 = smul.addr %s1335, 64
        %s1337 = scalar_lea.vmem [#allocation11], %s1336
        // Predicated region
        $region61: #{tpu_custom_call.1} parent=39 // pred_check
          %p1338 = pneg %p152
        $region62: #{tpu_custom_call.1} parent=39 // pred_check_branch
          %1340 = sbr.rel (%p1338) target = $region64
        $region63: #{tpu_custom_call.1} parent=39 // pred_region
          %s1342 = ssub.s32 1024, 1024
          %1343 = vsyncadd %s1334, %s1342
          %s1344 = smul.addr %s24, 8
          %s1345 = smul.addr %s1344, 128
          %s1346 = scalar_lea.hbm %s5, %s1345
          %s1347 = sshll.u32 %s1337, 4
          %s1348 = int_to_ptr.vmem [resolvable:$true] %s1347
          %1353 = dma.vmem_to_hbm [thread:$0]  %s1348, 1024, %s1346, %s1334, 512, 512, 32
        $region64: #{tpu_custom_call.1} parent=39 // pred_fallthru
          _
      $region40: #{tpu_custom_call.1} parent=5 // pred_fallthru
        _
      %p1354 = scmp.le.s32.totalorder 2, %s19
      // Predicated region
      $region65: #{tpu_custom_call.1} parent=5 // pred_check
        %p1355 = pneg %p1354
      $region66: #{tpu_custom_call.1} parent=5 // pred_check_branch
        %1357 = sbr.rel (%p1355) target = $region68
      $region67: #{tpu_custom_call.1} parent=5 // pred_region
        %s1358 = ssub.s32 %s19, 2
        // Predicated region
        $region69: #{tpu_custom_call.1} parent=67 // pred_check
          %p1359 = pneg %p158
        $region70: #{tpu_custom_call.1} parent=67 // pred_check_branch
          %1361 = sbr.rel (%p1359) target = $region72
        $region71: #{tpu_custom_call.1} parent=67 // pred_region
          %s1362 = sand.u32 %s143, 1
          %s1363 = scalar_lea.sflag [#allocation4], %s1362
          %s1364 = sand.u32 %s143, 1
          %s1365 = smul.addr %s1364, 64
          %s1366 = scalar_lea.vmem [#allocation11], %s1365
          %1367 = dma.done %s1363, 1024
        $region72: #{tpu_custom_call.1} parent=67 // pred_fallthru
          _
      $region68: #{tpu_custom_call.1} parent=5 // pred_fallthru
        _
    $region6: #{tpu_custom_call.1} parent=1 // loop_footer
      %s23 = sadd.s32 1, %s19
    $region7: #{tpu_custom_call.1} parent=1 // loop_footer_branch
      %18 = sbr.rel target = $region3
    $region8: #{tpu_custom_call.1} parent=1 // loop_exit
      _
    %1368 = vsyncpa [#allocation3], 1
    %s1369 = scalar_lea.sflag [#allocation3], 1
    %1370 = vsyncpa %s1369, 1
    %1371 = vsyncpa [#allocation6], 1
    %1372 = vsyncpa [#allocation9], 1
    %1373 = vsyncpa [#allocation4], 1
    %s1374 = scalar_lea.sflag [#allocation4], 1
    %1375 = vsyncpa %s1374, 1

</llo_original>
